<compile_context>
chip_gen: v6e
topology: v6e:2x2x1
jax: 0.10.0
libtpu: 0.0.40
codegen_flags: <defaults>
</compile_context>

<pallas_src>
import functools
import math

import jax
import jax.numpy as jnp
from jax.experimental import pallas as pl
from jax.experimental.pallas import tpu as pltpu

LN_EPS = 1e-12

# packed small-param layout: one sublane row per param, lane-padded to 128
(_ROW_BQKV, _ROW_BO, _ROW_LN1G, _ROW_LN1B,
 _ROW_B1, _ROW_B2, _ROW_LN2G, _ROW_LN2B) = range(8)


# ----------------------------- in-kernel helpers -----------------------------

def _layernorm(x, gamma, beta):
    mu = jnp.mean(x, axis=-1, keepdims=True)
    var = jnp.mean((x - mu) ** 2, axis=-1, keepdims=True)
    return (x - mu) * jax.lax.rsqrt(var + LN_EPS) * gamma + beta


def _gelu(x):
    # tanh approximation (HF BERT uses exact erf GELU; irrelevant for this
    # synthetic init, tanh keeps the math on the EUP path).
    return 0.5 * x * (1.0 + jnp.tanh(0.7978845608028654 * (x + 0.044715 * x * x * x)))


# ------------------------------ fused kernel ---------------------------------

def fused_forward_kernel(num_heads,
                         emb_ref, bias_ref, eg_ref, eb_ref,
                         wqkv_ref, wo_ref, w1_ref, w2_ref, pk_ref,
                         cw_ref, cb_ref,
                         out_ref, x_scr):
    """Grid = (batch, layer).  One step == one encoder layer of one sequence.

    x_scr (S, H) f32 stays resident in VMEM across the (inner) layer axis.
    """
    layer = pl.program_id(1)
    S, H = x_scr.shape
    dh = H // num_heads
    F = w1_ref.shape[-1]

    # ---- embedding LayerNorm (first layer iteration of each sequence) ----
    @pl.when(layer == 0)
    def _init():
        x_scr[...] = _layernorm(emb_ref[...], eg_ref[...], eb_ref[...])

    x = x_scr[...]                              # (S, H) f32

    # packed small per-layer params: one DMA, sliced in-kernel (static slices)
    pk = pk_ref[0]                              # (8, 128) f32
    bqkv = pk[_ROW_BQKV:_ROW_BQKV + 1, :3 * H]  # (1, 3H)
    bo = pk[_ROW_BO:_ROW_BO + 1, :H]
    ln1_g = pk[_ROW_LN1G:_ROW_LN1G + 1, :H]
    ln1_b = pk[_ROW_LN1B:_ROW_LN1B + 1, :H]
    b1 = pk[_ROW_B1:_ROW_B1 + 1, :F]
    b2 = pk[_ROW_B2:_ROW_B2 + 1, :H]
    ln2_g = pk[_ROW_LN2G:_ROW_LN2G + 1, :H]
    ln2_b = pk[_ROW_LN2B:_ROW_LN2B + 1, :H]

    bias = bias_ref[0]                          # (1, S) additive key mask

    # ---- self-attention: fused QKV projection (bf16 MXU, f32 accumulate) ----
    qkv = jnp.dot(x.astype(jnp.bfloat16), wqkv_ref[0],
                  preferred_element_type=jnp.float32) + bqkv       # (S, 3H)

    wo = wo_ref[0]                                                 # (H, H) bf16
    attn = jnp.zeros((S, H), jnp.float32)
    # NOTE: the 1/sqrt(dh) scale is folded into the Q weights at init, so no
    # per-score scaling here.
    # TODO(synk): for realistic num_heads (12+), replace this static unroll by
    # a batched einsum over a leading head axis to bound vreg live ranges.
    for h in range(num_heads):                  # static, small head count
        qh = qkv[:, h * dh:(h + 1) * dh].astype(jnp.bfloat16)              # (S, dh)
        kh = qkv[:, H + h * dh:H + (h + 1) * dh].astype(jnp.bfloat16)
        vh = qkv[:, 2 * H + h * dh:2 * H + (h + 1) * dh].astype(jnp.bfloat16)
        # per-sequence scores (S, S); padded keys killed by the additive bias
        s = jax.lax.dot_general(qh, kh, (((1,), (1,)), ((), ())),
                                preferred_element_type=jnp.float32)
        s = s + bias
        s = s - jnp.max(s, axis=-1, keepdims=True)
        p = jnp.exp(s)
        p = p * pl.reciprocal(jnp.sum(p, axis=-1, keepdims=True), approx=True)
        ctx = jnp.dot(p.astype(jnp.bfloat16), vh,
                      preferred_element_type=jnp.float32)                   # (S, dh)
        # fold the per-head output projection in (no lane-wise concatenate)
        attn = attn + jnp.dot(ctx.astype(jnp.bfloat16),
                              wo[h * dh:(h + 1) * dh, :],
                              preferred_element_type=jnp.float32)
    attn = attn + bo
    y = _layernorm(x + attn, ln1_g, ln1_b)

    # ---- feed-forward ----
    h1 = jnp.dot(y.astype(jnp.bfloat16), w1_ref[0],
                 preferred_element_type=jnp.float32) + b1
    h1 = _gelu(h1)
    h2 = jnp.dot(h1.astype(jnp.bfloat16), w2_ref[0],
                 preferred_element_type=jnp.float32) + b2
    x_new = _layernorm(y + h2, ln2_g, ln2_b)
    x_scr[...] = x_new

    # ---- classifier on the last layer: lane-dense 128-wide output ----
    @pl.when(layer == pl.num_programs(1) - 1)
    def _final():
        out_ref[...] = jnp.dot(x_new.astype(jnp.bfloat16), cw_ref[...],
                               preferred_element_type=jnp.float32) + cb_ref[...]


# ------------------------------ pallas_call wrapper ---------------------------

def run_fused_forward(params, emb_flat, mask_bias, seq_len):
    BS, H = emb_flat.shape
    S = seq_len
    B = BS // S
    L = params['wqkv'].shape[0]
    F = params['w1'].shape[-1]
    c_pad = params['cls_w'].shape[1]
    pack_w = params['packed'].shape[-1]

    in_specs = [
        pl.BlockSpec((S, H), lambda b, l: (b, 0)),              # embeddings
        pl.BlockSpec((1, 1, S), lambda b, l: (b, 0, 0)),        # key-mask bias
        pl.BlockSpec((1, H), lambda b, l: (0, 0)),              # emb LN gamma
        pl.BlockSpec((1, H), lambda b, l: (0, 0)),              # emb LN beta
        pl.BlockSpec((1, H, 3 * H), lambda b, l: (l, 0, 0)),    # wqkv
        pl.BlockSpec((1, H, H), lambda b, l: (l, 0, 0)),        # wo
        pl.BlockSpec((1, H, F), lambda b, l: (l, 0, 0)),        # w1
        pl.BlockSpec((1, F, H), lambda b, l: (l, 0, 0)),        # w2
        pl.BlockSpec((1, 8, pack_w), lambda b, l: (l, 0, 0)),   # packed small params
        pl.BlockSpec((H, c_pad), lambda b, l: (0, 0)),          # classifier W
        pl.BlockSpec((1, c_pad), lambda b, l: (0, 0)),          # classifier b
    ]

    return pl.pallas_call(
        functools.partial(fused_forward_kernel, params['num_heads']),
        grid=(B, L),
        in_specs=in_specs,
        out_specs=pl.BlockSpec((S, c_pad), lambda b, l: (b, 0)),
        out_shape=jax.ShapeDtypeStruct((BS, c_pad), jnp.float32),
        scratch_shapes=[pltpu.VMEM((S, H), jnp.float32)],
        compiler_params=pltpu.CompilerParams(
            dimension_semantics=("parallel", "arbitrary"),
            # explicit budget: comfortably inside v7x's 64 MiB VMEM, and the
            # same limit on v5e/v6e so all generations compile identically.
            vmem_limit_bytes=48 * 1024 * 1024,
        ),
    )(emb_flat, mask_bias,
      params['emb_ln_g'], params['emb_ln_b'],
      params['wqkv'], params['wo'], params['w1'], params['w2'], params['packed'],
      params['cls_w'], params['cls_b'])


# ------------------------------ parameter init --------------------------------

def init_params(key, *, vocab=30, max_pos=16, type_vocab=2, hidden=32,
                ff=64, num_layers=2, num_heads=2, class_num=4, c_pad=128):
    def nrm(k, shape, scale=0.02):
        return (scale * jax.random.normal(k, shape)).astype(jnp.float32)

    ks = iter(jax.random.split(key, 16))
    L, H, F = num_layers, hidden, ff
    dh = H // num_heads

    # fused QKV weight; fold the 1/sqrt(dh) attention scale into the Q block.
    wqkv = nrm(next(ks), (L, H, 3 * H))
    wqkv = wqkv.at[:, :, :H].multiply(1.0 / math.sqrt(dh))

    # packed small per-layer params (biases are zero, LN gammas are one).
    # NOTE: if the q-bias were nonzero it would need the same 1/sqrt(dh) scale.
    pack_w = max(128, -(-max(3 * H, F) // 128) * 128)
    packed = jnp.zeros((L, 8, pack_w), jnp.float32)
    packed = packed.at[:, _ROW_LN1G, :H].set(1.0)
    packed = packed.at[:, _ROW_LN2G, :H].set(1.0)

    cls_w = nrm(next(ks), (H, class_num))
    cls_w_pad = jnp.zeros((H, c_pad), jnp.float32).at[:, :class_num].set(cls_w)

    return {
        'num_heads': num_heads,
        'class_num': class_num,
        'word_emb': nrm(next(ks), (vocab, H)),
        'pos_emb': nrm(next(ks), (max_pos, H)),
        'type_emb': nrm(next(ks), (type_vocab, H)),
        'emb_ln_g': jnp.ones((1, H), jnp.float32),
        'emb_ln_b': jnp.zeros((1, H), jnp.float32),
        # stacked per-layer matmul weights in bf16 (f32 accumulation in-kernel)
        'wqkv': wqkv.astype(jnp.bfloat16),
        'wo': nrm(next(ks), (L, H, H)).astype(jnp.bfloat16),
        'w1': nrm(next(ks), (L, H, F)).astype(jnp.bfloat16),
        'w2': nrm(next(ks), (L, F, H)).astype(jnp.bfloat16),
        'packed': packed,
        # classifier padded to a dense 128-lane output tile
        'cls_w': cls_w_pad.astype(jnp.bfloat16),
        'cls_b': jnp.zeros((1, c_pad), jnp.float32),
    }


# ------------------------------ forward pass -----------------------------------

def torch_model_forward(params, input_ids, attention_mask):
    """TorchModel.forward with target=None, use_crf=False -> returns `predict`."""
    B, S = input_ids.shape
    H = params['word_emb'].shape[1]
    C = params['class_num']

    # BERT embeddings (gathers are plain-JAX glue; LayerNorm runs in-kernel)
    emb = (jnp.take(params['word_emb'], input_ids, axis=0)
           + params['pos_emb'][None, :S, :]
           + params['type_emb'][0][None, None, :])
    emb_flat = emb.reshape(B * S, H).astype(jnp.float32)

    # O(B*S) per-key additive bias (BERT masks keys only), broadcast in-kernel.
    valid = attention_mask.astype(jnp.float32)
    mask_bias = jnp.where(valid > 0.5, 0.0, -1e9)[:, None, :]    # (B, 1, S)

    out = run_fused_forward(params, emb_flat, mask_bias, S)      # (B*S, 128)
    predict = out.reshape(B, S, -1)[:, :, :C]                    # (B, S, class_num)
    # TODO(synk): CRF log-likelihood / Viterbi decode (use_crf=True) and the
    # masked CrossEntropyLoss training branch are sequential/host-side logic
    # with no clean Pallas hot path; only the inference logits path is kernelized.
    return predict


# ------------------------------ main --------------------------------------------

if __name__ == "__main__":
    key = jax.random.PRNGKey(0)
    pkey, ikey = jax.random.split(key)

    B, S = 2, 8
    VOCAB, CLASS_NUM = 30, 4

    params = init_params(pkey, vocab=VOCAB, class_num=CLASS_NUM)

    input_ids = jax.random.randint(ikey, (B, S), 0, VOCAB, dtype=jnp.int32)
    # first sequence fully valid, second has 3 padded positions
    attention_mask = jnp.array([[1, 1, 1, 1, 1, 1, 1, 1],
                                [1, 1, 1, 1, 1, 0, 0, 0]], dtype=jnp.int32)

    predict = torch_model_forward(params, input_ids, attention_mask)
    predict = jax.block_until_ready(predict)

    assert predict.shape == (B, S, CLASS_NUM), predict.shape
    assert bool(jnp.all(jnp.isfinite(predict)))
    print("KERNEL_OK")
</pallas_src>

<mosaic_0001>
module attributes {stable_mosaic.version = 11 : i64} {
  func.func @fused_forward_kernel(%arg0: i32, %arg1: i32, %arg2: memref<8x32xf32, #tpu.memory_space<vmem>>, %arg3: memref<1x1x8xf32, #tpu.memory_space<vmem>>, %arg4: memref<1x32xf32, #tpu.memory_space<vmem>>, %arg5: memref<1x32xf32, #tpu.memory_space<vmem>>, %arg6: memref<1x32x96xbf16, #tpu.memory_space<vmem>>, %arg7: memref<1x32x32xbf16, #tpu.memory_space<vmem>>, %arg8: memref<1x32x64xbf16, #tpu.memory_space<vmem>>, %arg9: memref<1x64x32xbf16, #tpu.memory_space<vmem>>, %arg10: memref<1x8x128xf32, #tpu.memory_space<vmem>>, %arg11: memref<32x128xbf16, #tpu.memory_space<vmem>>, %arg12: memref<1x128xf32, #tpu.memory_space<vmem>>, %arg13: memref<8x128xf32, #tpu.memory_space<vmem>>, %arg14: memref<8x32xf32, #tpu.memory_space<vmem>>) attributes {dimension_semantics = [#tpu.dimension_semantics<parallel>, #tpu.dimension_semantics<arbitrary>], iteration_bounds = array<i64: 2, 2>, scalar_prefetch = 0 : i64, scratch_operands = 1 : i64, tpu.core_type = #tpu.core_type<tc>, window_params = [{transform_indices = @transform_0, window_bounds = array<i64: 8, 32>}, {transform_indices = @transform_1, window_bounds = array<i64: 1, 1, 8>}, {pipeline_mode = #tpu.pipeline_mode<synchronous>, transform_indices = @transform_2, window_bounds = array<i64: 1, 32>}, {pipeline_mode = #tpu.pipeline_mode<synchronous>, transform_indices = @transform_3, window_bounds = array<i64: 1, 32>}, {transform_indices = @transform_4, window_bounds = array<i64: 1, 32, 96>}, {transform_indices = @transform_5, window_bounds = array<i64: 1, 32, 32>}, {transform_indices = @transform_6, window_bounds = array<i64: 1, 32, 64>}, {transform_indices = @transform_7, window_bounds = array<i64: 1, 64, 32>}, {transform_indices = @transform_8, window_bounds = array<i64: 1, 8, 128>}, {pipeline_mode = #tpu.pipeline_mode<synchronous>, transform_indices = @transform_9, window_bounds = array<i64: 32, 128>}, {pipeline_mode = #tpu.pipeline_mode<synchronous>, transform_indices = @transform_10, window_bounds = array<i64: 1, 128>}, {transform_indices = @transform_11, window_bounds = array<i64: 8, 128>}]} {
    %c0_i32 = arith.constant 0 : i32
    %0 = arith.cmpi eq, %arg1, %c0_i32 : i32
    %1 = arith.extui %0 : i1 to i32
    %c0_i32_0 = arith.constant 0 : i32
    %2 = arith.cmpi ne, %1, %c0_i32_0 : i32
    scf.if %2 {
      %c0_50 = arith.constant 0 : index
      %c0_51 = arith.constant 0 : index
      %152 = vector.load %arg2[%c0_50, %c0_51] : memref<8x32xf32, #tpu.memory_space<vmem>>, vector<8x32xf32>
      %c0_52 = arith.constant 0 : index
      %c0_53 = arith.constant 0 : index
      %153 = vector.load %arg4[%c0_52, %c0_53] : memref<1x32xf32, #tpu.memory_space<vmem>>, vector<1x32xf32>
      %c0_54 = arith.constant 0 : index
      %c0_55 = arith.constant 0 : index
      %154 = vector.load %arg5[%c0_54, %c0_55] : memref<1x32xf32, #tpu.memory_space<vmem>>, vector<1x32xf32>
      %cst_56 = arith.constant dense<0.000000e+00> : vector<8xf32>
      %155 = vector.multi_reduction <add>, %152, %cst_56 [1] : vector<8x32xf32> to vector<8xf32>
      %156 = vector.shape_cast %155 : vector<8xf32> to vector<8x1xf32>
      %cst_57 = arith.constant 3.200000e+01 : f32
      %157 = vector.broadcast %cst_57 : f32 to vector<8x1xf32>
      %158 = arith.divf %156, %157 : vector<8x1xf32>
      %159 = vector.broadcast %158 : vector<8x1xf32> to vector<8x32xf32>
      %160 = arith.subf %152, %159 : vector<8x32xf32>
      %161 = arith.mulf %160, %160 : vector<8x32xf32>
      %cst_58 = arith.constant dense<0.000000e+00> : vector<8xf32>
      %162 = vector.multi_reduction <add>, %161, %cst_58 [1] : vector<8x32xf32> to vector<8xf32>
      %163 = vector.shape_cast %162 : vector<8xf32> to vector<8x1xf32>
      %cst_59 = arith.constant 3.200000e+01 : f32
      %164 = vector.broadcast %cst_59 : f32 to vector<8x1xf32>
      %165 = arith.divf %163, %164 : vector<8x1xf32>
      %166 = vector.broadcast %158 : vector<8x1xf32> to vector<8x32xf32>
      %167 = arith.subf %152, %166 : vector<8x32xf32>
      %cst_60 = arith.constant 9.99999996E-13 : f32
      %168 = vector.broadcast %cst_60 : f32 to vector<8x1xf32>
      %169 = arith.addf %165, %168 : vector<8x1xf32>
      %170 = math.rsqrt %169 : vector<8x1xf32>
      %171 = vector.broadcast %170 : vector<8x1xf32> to vector<8x32xf32>
      %172 = arith.mulf %167, %171 : vector<8x32xf32>
      %173 = vector.broadcast %153 : vector<1x32xf32> to vector<8x32xf32>
      %174 = arith.mulf %172, %173 : vector<8x32xf32>
      %175 = vector.broadcast %154 : vector<1x32xf32> to vector<8x32xf32>
      %176 = arith.addf %174, %175 : vector<8x32xf32>
      %c0_61 = arith.constant 0 : index
      %c0_62 = arith.constant 0 : index
      %177 = vector.load %arg14[%c0_61, %c0_62] : memref<8x32xf32, #tpu.memory_space<vmem>>, vector<8x32xf32>
      tpu.vector_store %arg14[%c0_61, %c0_62], %176 {strides = array<i32>} : memref<8x32xf32, #tpu.memory_space<vmem>>, vector<8x32xf32>,
    } else {
    }
    %c0 = arith.constant 0 : index
    %c0_1 = arith.constant 0 : index
    %3 = vector.load %arg14[%c0, %c0_1] : memref<8x32xf32, #tpu.memory_space<vmem>>, vector<8x32xf32>
    %c0_2 = arith.constant 0 : index
    %c0_3 = arith.constant 0 : index
    %c0_4 = arith.constant 0 : index
    %4 = vector.load %arg10[%c0_2, %c0_3, %c0_4] : memref<1x8x128xf32, #tpu.memory_space<vmem>>, vector<1x8x128xf32>
    %5 = vector.shape_cast %4 : vector<1x8x128xf32> to vector<8x128xf32>
    %6 = vector.extract_strided_slice %5 {offsets = [0, 0], sizes = [1, 96], strides = [1, 1]} : vector<8x128xf32> to vector<1x96xf32>
    %7 = vector.extract_strided_slice %5 {offsets = [1, 0], sizes = [1, 32], strides = [1, 1]} : vector<8x128xf32> to vector<1x32xf32>
    %8 = vector.extract_strided_slice %5 {offsets = [2, 0], sizes = [1, 32], strides = [1, 1]} : vector<8x128xf32> to vector<1x32xf32>
    %9 = vector.extract_strided_slice %5 {offsets = [3, 0], sizes = [1, 32], strides = [1, 1]} : vector<8x128xf32> to vector<1x32xf32>
    %10 = vector.extract_strided_slice %5 {offsets = [4, 0], sizes = [1, 64], strides = [1, 1]} : vector<8x128xf32> to vector<1x64xf32>
    %11 = vector.extract_strided_slice %5 {offsets = [5, 0], sizes = [1, 32], strides = [1, 1]} : vector<8x128xf32> to vector<1x32xf32>
    %12 = vector.extract_strided_slice %5 {offsets = [6, 0], sizes = [1, 32], strides = [1, 1]} : vector<8x128xf32> to vector<1x32xf32>
    %13 = vector.extract_strided_slice %5 {offsets = [7, 0], sizes = [1, 32], strides = [1, 1]} : vector<8x128xf32> to vector<1x32xf32>
    %c0_5 = arith.constant 0 : index
    %c0_6 = arith.constant 0 : index
    %c0_7 = arith.constant 0 : index
    %14 = vector.load %arg3[%c0_5, %c0_6, %c0_7] : memref<1x1x8xf32, #tpu.memory_space<vmem>>, vector<1x1x8xf32>
    %15 = vector.shape_cast %14 : vector<1x1x8xf32> to vector<1x8xf32>
    %16 = arith.truncf %3 : vector<8x32xf32> to vector<8x32xbf16>
    %c0_8 = arith.constant 0 : index
    %c0_9 = arith.constant 0 : index
    %c0_10 = arith.constant 0 : index
    %17 = vector.load %arg6[%c0_8, %c0_9, %c0_10] : memref<1x32x96xbf16, #tpu.memory_space<vmem>>, vector<1x32x96xbf16>
    %18 = vector.shape_cast %17 : vector<1x32x96xbf16> to vector<32x96xbf16>
    %cst = arith.constant dense<0.000000e+00> : vector<8x96xf32>
    %19 = tpu.matmul %16, %18, %cst {dimension_numbers = #tpu.dot_dimension_numbers<[1], [0], [0], [1], [0, 0, 1, 1], [], []>} : vector<8x32xbf16>, vector<32x96xbf16>, vector<8x96xf32> -> vector<8x96xf32>
    %20 = vector.broadcast %6 : vector<1x96xf32> to vector<8x96xf32>
    %21 = arith.addf %19, %20 : vector<8x96xf32>
    %c0_11 = arith.constant 0 : index
    %c0_12 = arith.constant 0 : index
    %c0_13 = arith.constant 0 : index
    %22 = vector.load %arg7[%c0_11, %c0_12, %c0_13] : memref<1x32x32xbf16, #tpu.memory_space<vmem>>, vector<1x32x32xbf16>
    %23 = vector.shape_cast %22 : vector<1x32x32xbf16> to vector<32x32xbf16>
    %cst_14 = arith.constant 0.000000e+00 : f32
    %24 = vector.broadcast %cst_14 : f32 to vector<8x32xf32>
    %25 = vector.extract_strided_slice %21 {offsets = [0, 0], sizes = [8, 16], strides = [1, 1]} : vector<8x96xf32> to vector<8x16xf32>
    %26 = arith.truncf %25 : vector<8x16xf32> to vector<8x16xbf16>
    %27 = vector.extract_strided_slice %21 {offsets = [0, 32], sizes = [8, 16], strides = [1, 1]} : vector<8x96xf32> to vector<8x16xf32>
    %28 = arith.truncf %27 : vector<8x16xf32> to vector<8x16xbf16>
    %29 = vector.extract_strided_slice %21 {offsets = [0, 64], sizes = [8, 16], strides = [1, 1]} : vector<8x96xf32> to vector<8x16xf32>
    %30 = arith.truncf %29 : vector<8x16xf32> to vector<8x16xbf16>
    %cst_15 = arith.constant dense<0.000000e+00> : vector<8x8xf32>
    %31 = tpu.matmul %26, %28, %cst_15 {dimension_numbers = #tpu.dot_dimension_numbers<[1], [1], [0], [0], [0, 0, 1, 0], [], []>} : vector<8x16xbf16>, vector<8x16xbf16>, vector<8x8xf32> -> vector<8x8xf32>
    %32 = vector.broadcast %15 : vector<1x8xf32> to vector<8x8xf32>
    %33 = arith.addf %31, %32 : vector<8x8xf32>
    %cst_16 = arith.constant dense<0xFF800000> : vector<8xf32>
    %34 = vector.multi_reduction <maximumf>, %33, %cst_16 [1] : vector<8x8xf32> to vector<8xf32>
    %35 = vector.shape_cast %34 : vector<8xf32> to vector<8x1xf32>
    %36 = vector.broadcast %35 : vector<8x1xf32> to vector<8x8xf32>
    %37 = arith.subf %33, %36 : vector<8x8xf32>
    %38 = math.exp %37 : vector<8x8xf32>
    %cst_17 = arith.constant dense<0.000000e+00> : vector<8xf32>
    %39 = vector.multi_reduction <add>, %38, %cst_17 [1] : vector<8x8xf32> to vector<8xf32>
    %40 = vector.shape_cast %39 : vector<8xf32> to vector<8x1xf32>
    %41 = tpu.reciprocal %40 {approx = true} : vector<8x1xf32> -> vector<8x1xf32>
    %42 = vector.broadcast %41 : vector<8x1xf32> to vector<8x8xf32>
    %43 = arith.mulf %38, %42 : vector<8x8xf32>
    %44 = arith.truncf %43 : vector<8x8xf32> to vector<8x8xbf16>
    %cst_18 = arith.constant dense<0.000000e+00> : vector<8x16xf32>
    %45 = tpu.matmul %44, %30, %cst_18 {dimension_numbers = #tpu.dot_dimension_numbers<[1], [0], [0], [1], [0, 0, 1, 1], [], []>} : vector<8x8xbf16>, vector<8x16xbf16>, vector<8x16xf32> -> vector<8x16xf32>
    %46 = arith.truncf %45 : vector<8x16xf32> to vector<8x16xbf16>
    %47 = vector.extract_strided_slice %23 {offsets = [0, 0], sizes = [16, 32], strides = [1, 1]} : vector<32x32xbf16> to vector<16x32xbf16>
    %cst_19 = arith.constant dense<0.000000e+00> : vector<8x32xf32>
    %48 = tpu.matmul %46, %47, %cst_19 {dimension_numbers = #tpu.dot_dimension_numbers<[1], [0], [0], [1], [0, 0, 1, 1], [], []>} : vector<8x16xbf16>, vector<16x32xbf16>, vector<8x32xf32> -> vector<8x32xf32>
    %49 = arith.addf %24, %48 : vector<8x32xf32>
    %50 = vector.extract_strided_slice %21 {offsets = [0, 16], sizes = [8, 16], strides = [1, 1]} : vector<8x96xf32> to vector<8x16xf32>
    %51 = arith.truncf %50 : vector<8x16xf32> to vector<8x16xbf16>
    %52 = vector.extract_strided_slice %21 {offsets = [0, 48], sizes = [8, 16], strides = [1, 1]} : vector<8x96xf32> to vector<8x16xf32>
    %53 = arith.truncf %52 : vector<8x16xf32> to vector<8x16xbf16>
    %54 = vector.extract_strided_slice %21 {offsets = [0, 80], sizes = [8, 16], strides = [1, 1]} : vector<8x96xf32> to vector<8x16xf32>
    %55 = arith.truncf %54 : vector<8x16xf32> to vector<8x16xbf16>
    %cst_20 = arith.constant dense<0.000000e+00> : vector<8x8xf32>
    %56 = tpu.matmul %51, %53, %cst_20 {dimension_numbers = #tpu.dot_dimension_numbers<[1], [1], [0], [0], [0, 0, 1, 0], [], []>} : vector<8x16xbf16>, vector<8x16xbf16>, vector<8x8xf32> -> vector<8x8xf32>
    %57 = vector.broadcast %15 : vector<1x8xf32> to vector<8x8xf32>
    %58 = arith.addf %56, %57 : vector<8x8xf32>
    %cst_21 = arith.constant dense<0xFF800000> : vector<8xf32>
    %59 = vector.multi_reduction <maximumf>, %58, %cst_21 [1] : vector<8x8xf32> to vector<8xf32>
    %60 = vector.shape_cast %59 : vector<8xf32> to vector<8x1xf32>
    %61 = vector.broadcast %60 : vector<8x1xf32> to vector<8x8xf32>
    %62 = arith.subf %58, %61 : vector<8x8xf32>
    %63 = math.exp %62 : vector<8x8xf32>
    %cst_22 = arith.constant dense<0.000000e+00> : vector<8xf32>
    %64 = vector.multi_reduction <add>, %63, %cst_22 [1] : vector<8x8xf32> to vector<8xf32>
    %65 = vector.shape_cast %64 : vector<8xf32> to vector<8x1xf32>
    %66 = tpu.reciprocal %65 {approx = true} : vector<8x1xf32> -> vector<8x1xf32>
    %67 = vector.broadcast %66 : vector<8x1xf32> to vector<8x8xf32>
    %68 = arith.mulf %63, %67 : vector<8x8xf32>
    %69 = arith.truncf %68 : vector<8x8xf32> to vector<8x8xbf16>
    %cst_23 = arith.constant dense<0.000000e+00> : vector<8x16xf32>
    %70 = tpu.matmul %69, %55, %cst_23 {dimension_numbers = #tpu.dot_dimension_numbers<[1], [0], [0], [1], [0, 0, 1, 1], [], []>} : vector<8x8xbf16>, vector<8x16xbf16>, vector<8x16xf32> -> vector<8x16xf32>
    %71 = arith.truncf %70 : vector<8x16xf32> to vector<8x16xbf16>
    %72 = vector.extract_strided_slice %23 {offsets = [16, 0], sizes = [16, 32], strides = [1, 1]} : vector<32x32xbf16> to vector<16x32xbf16>
    %cst_24 = arith.constant dense<0.000000e+00> : vector<8x32xf32>
    %73 = tpu.matmul %71, %72, %cst_24 {dimension_numbers = #tpu.dot_dimension_numbers<[1], [0], [0], [1], [0, 0, 1, 1], [], []>} : vector<8x16xbf16>, vector<16x32xbf16>, vector<8x32xf32> -> vector<8x32xf32>
    %74 = arith.addf %49, %73 : vector<8x32xf32>
    %75 = vector.broadcast %7 : vector<1x32xf32> to vector<8x32xf32>
    %76 = arith.addf %74, %75 : vector<8x32xf32>
    %77 = arith.addf %3, %76 : vector<8x32xf32>
    %cst_25 = arith.constant dense<0.000000e+00> : vector<8xf32>
    %78 = vector.multi_reduction <add>, %77, %cst_25 [1] : vector<8x32xf32> to vector<8xf32>
    %79 = vector.shape_cast %78 : vector<8xf32> to vector<8x1xf32>
    %cst_26 = arith.constant 3.200000e+01 : f32
    %80 = vector.broadcast %cst_26 : f32 to vector<8x1xf32>
    %81 = arith.divf %79, %80 : vector<8x1xf32>
    %82 = vector.broadcast %81 : vector<8x1xf32> to vector<8x32xf32>
    %83 = arith.subf %77, %82 : vector<8x32xf32>
    %84 = arith.mulf %83, %83 : vector<8x32xf32>
    %cst_27 = arith.constant dense<0.000000e+00> : vector<8xf32>
    %85 = vector.multi_reduction <add>, %84, %cst_27 [1] : vector<8x32xf32> to vector<8xf32>
    %86 = vector.shape_cast %85 : vector<8xf32> to vector<8x1xf32>
    %cst_28 = arith.constant 3.200000e+01 : f32
    %87 = vector.broadcast %cst_28 : f32 to vector<8x1xf32>
    %88 = arith.divf %86, %87 : vector<8x1xf32>
    %89 = vector.broadcast %81 : vector<8x1xf32> to vector<8x32xf32>
    %90 = arith.subf %77, %89 : vector<8x32xf32>
    %cst_29 = arith.constant 9.99999996E-13 : f32
    %91 = vector.broadcast %cst_29 : f32 to vector<8x1xf32>
    %92 = arith.addf %88, %91 : vector<8x1xf32>
    %93 = math.rsqrt %92 : vector<8x1xf32>
    %94 = vector.broadcast %93 : vector<8x1xf32> to vector<8x32xf32>
    %95 = arith.mulf %90, %94 : vector<8x32xf32>
    %96 = vector.broadcast %8 : vector<1x32xf32> to vector<8x32xf32>
    %97 = arith.mulf %95, %96 : vector<8x32xf32>
    %98 = vector.broadcast %9 : vector<1x32xf32> to vector<8x32xf32>
    %99 = arith.addf %97, %98 : vector<8x32xf32>
    %100 = arith.truncf %99 : vector<8x32xf32> to vector<8x32xbf16>
    %c0_30 = arith.constant 0 : index
    %c0_31 = arith.constant 0 : index
    %c0_32 = arith.constant 0 : index
    %101 = vector.load %arg8[%c0_30, %c0_31, %c0_32] : memref<1x32x64xbf16, #tpu.memory_space<vmem>>, vector<1x32x64xbf16>
    %102 = vector.shape_cast %101 : vector<1x32x64xbf16> to vector<32x64xbf16>
    %cst_33 = arith.constant dense<0.000000e+00> : vector<8x64xf32>
    %103 = tpu.matmul %100, %102, %cst_33 {dimension_numbers = #tpu.dot_dimension_numbers<[1], [0], [0], [1], [0, 0, 1, 1], [], []>} : vector<8x32xbf16>, vector<32x64xbf16>, vector<8x64xf32> -> vector<8x64xf32>
    %104 = vector.broadcast %10 : vector<1x64xf32> to vector<8x64xf32>
    %105 = arith.addf %103, %104 : vector<8x64xf32>
    %cst_34 = arith.constant 5.000000e-01 : f32
    %106 = vector.broadcast %cst_34 : f32 to vector<8x64xf32>
    %107 = arith.mulf %106, %105 : vector<8x64xf32>
    %cst_35 = arith.constant 4.471500e-02 : f32
    %108 = vector.broadcast %cst_35 : f32 to vector<8x64xf32>
    %109 = arith.mulf %108, %105 : vector<8x64xf32>
    %110 = arith.mulf %109, %105 : vector<8x64xf32>
    %111 = arith.mulf %110, %105 : vector<8x64xf32>
    %112 = arith.addf %105, %111 : vector<8x64xf32>
    %cst_36 = arith.constant 0.797884583 : f32
    %113 = vector.broadcast %cst_36 : f32 to vector<8x64xf32>
    %114 = arith.mulf %113, %112 : vector<8x64xf32>
    %115 = math.tanh %114 : vector<8x64xf32>
    %cst_37 = arith.constant 1.000000e+00 : f32
    %116 = vector.broadcast %cst_37 : f32 to vector<8x64xf32>
    %117 = arith.addf %116, %115 : vector<8x64xf32>
    %118 = arith.mulf %107, %117 : vector<8x64xf32>
    %119 = arith.truncf %118 : vector<8x64xf32> to vector<8x64xbf16>
    %c0_38 = arith.constant 0 : index
    %c0_39 = arith.constant 0 : index
    %c0_40 = arith.constant 0 : index
    %120 = vector.load %arg9[%c0_38, %c0_39, %c0_40] : memref<1x64x32xbf16, #tpu.memory_space<vmem>>, vector<1x64x32xbf16>
    %121 = vector.shape_cast %120 : vector<1x64x32xbf16> to vector<64x32xbf16>
    %cst_41 = arith.constant dense<0.000000e+00> : vector<8x32xf32>
    %122 = tpu.matmul %119, %121, %cst_41 {dimension_numbers = #tpu.dot_dimension_numbers<[1], [0], [0], [1], [0, 0, 1, 1], [], []>} : vector<8x64xbf16>, vector<64x32xbf16>, vector<8x32xf32> -> vector<8x32xf32>
    %123 = vector.broadcast %11 : vector<1x32xf32> to vector<8x32xf32>
    %124 = arith.addf %122, %123 : vector<8x32xf32>
    %125 = arith.addf %99, %124 : vector<8x32xf32>
    %cst_42 = arith.constant dense<0.000000e+00> : vector<8xf32>
    %126 = vector.multi_reduction <add>, %125, %cst_42 [1] : vector<8x32xf32> to vector<8xf32>
    %127 = vector.shape_cast %126 : vector<8xf32> to vector<8x1xf32>
    %cst_43 = arith.constant 3.200000e+01 : f32
    %128 = vector.broadcast %cst_43 : f32 to vector<8x1xf32>
    %129 = arith.divf %127, %128 : vector<8x1xf32>
    %130 = vector.broadcast %129 : vector<8x1xf32> to vector<8x32xf32>
    %131 = arith.subf %125, %130 : vector<8x32xf32>
    %132 = arith.mulf %131, %131 : vector<8x32xf32>
    %cst_44 = arith.constant dense<0.000000e+00> : vector<8xf32>
    %133 = vector.multi_reduction <add>, %132, %cst_44 [1] : vector<8x32xf32> to vector<8xf32>
    %134 = vector.shape_cast %133 : vector<8xf32> to vector<8x1xf32>
    %cst_45 = arith.constant 3.200000e+01 : f32
    %135 = vector.broadcast %cst_45 : f32 to vector<8x1xf32>
    %136 = arith.divf %134, %135 : vector<8x1xf32>
    %137 = vector.broadcast %129 : vector<8x1xf32> to vector<8x32xf32>
    %138 = arith.subf %125, %137 : vector<8x32xf32>
    %cst_46 = arith.constant 9.99999996E-13 : f32
    %139 = vector.broadcast %cst_46 : f32 to vector<8x1xf32>
    %140 = arith.addf %136, %139 : vector<8x1xf32>
    %141 = math.rsqrt %140 : vector<8x1xf32>
    %142 = vector.broadcast %141 : vector<8x1xf32> to vector<8x32xf32>
    %143 = arith.mulf %138, %142 : vector<8x32xf32>
    %144 = vector.broadcast %12 : vector<1x32xf32> to vector<8x32xf32>
    %145 = arith.mulf %143, %144 : vector<8x32xf32>
    %146 = vector.broadcast %13 : vector<1x32xf32> to vector<8x32xf32>
    %147 = arith.addf %145, %146 : vector<8x32xf32>
    %c0_47 = arith.constant 0 : index
    %c0_48 = arith.constant 0 : index
    %148 = vector.load %arg14[%c0_47, %c0_48] : memref<8x32xf32, #tpu.memory_space<vmem>>, vector<8x32xf32>
    tpu.vector_store %arg14[%c0_47, %c0_48], %147 {strides = array<i32>} : memref<8x32xf32, #tpu.memory_space<vmem>>, vector<8x32xf32>,
    %c1_i32 = arith.constant 1 : i32
    %149 = arith.cmpi eq, %arg1, %c1_i32 : i32
    %150 = arith.extui %149 : i1 to i32
    %c0_i32_49 = arith.constant 0 : i32
    %151 = arith.cmpi ne, %150, %c0_i32_49 : i32
    scf.if %151 {
      %152 = arith.truncf %147 : vector<8x32xf32> to vector<8x32xbf16>
      %c0_50 = arith.constant 0 : index
      %c0_51 = arith.constant 0 : index
      %153 = vector.load %arg11[%c0_50, %c0_51] : memref<32x128xbf16, #tpu.memory_space<vmem>>, vector<32x128xbf16>
      %cst_52 = arith.constant dense<0.000000e+00> : vector<8x128xf32>
      %154 = tpu.matmul %152, %153, %cst_52 {dimension_numbers = #tpu.dot_dimension_numbers<[1], [0], [0], [1], [0, 0, 1, 1], [], []>} : vector<8x32xbf16>, vector<32x128xbf16>, vector<8x128xf32> -> vector<8x128xf32>
      %c0_53 = arith.constant 0 : index
      %c0_54 = arith.constant 0 : index
      %155 = vector.load %arg12[%c0_53, %c0_54] : memref<1x128xf32, #tpu.memory_space<vmem>>, vector<1x128xf32>
      %156 = vector.broadcast %155 : vector<1x128xf32> to vector<8x128xf32>
      %157 = arith.addf %154, %156 : vector<8x128xf32>
      %c0_55 = arith.constant 0 : index
      %c0_56 = arith.constant 0 : index
      %158 = vector.load %arg13[%c0_55, %c0_56] : memref<8x128xf32, #tpu.memory_space<vmem>>, vector<8x128xf32>
      tpu.vector_store %arg13[%c0_55, %c0_56], %157 {strides = array<i32>} : memref<8x128xf32, #tpu.memory_space<vmem>>, vector<8x128xf32>,
    } else {
    }
    return
  }
  func.func @transform_0(%arg0: i32, %arg1: i32) -> (i32, i32) {
    %c0_i32 = arith.constant 0 : i32
    %c0_i32_0 = arith.constant 0 : i32
    return %arg0, %c0_i32 : i32, i32
  }
  func.func @transform_1(%arg0: i32, %arg1: i32) -> (i32, i32, i32) {
    %c0_i32 = arith.constant 0 : i32
    %c0_i32_0 = arith.constant 0 : i32
    %c0_i32_1 = arith.constant 0 : i32
    return %arg0, %c0_i32, %c0_i32_0 : i32, i32, i32
  }
  func.func @transform_2(%arg0: i32, %arg1: i32) -> (i32, i32) {
    %c0_i32 = arith.constant 0 : i32
    %c0_i32_0 = arith.constant 0 : i32
    %c0_i32_1 = arith.constant 0 : i32
    return %c0_i32, %c0_i32_0 : i32, i32
  }
  func.func @transform_3(%arg0: i32, %arg1: i32) -> (i32, i32) {
    %c0_i32 = arith.constant 0 : i32
    %c0_i32_0 = arith.constant 0 : i32
    %c0_i32_1 = arith.constant 0 : i32
    return %c0_i32, %c0_i32_0 : i32, i32
  }
  func.func @transform_4(%arg0: i32, %arg1: i32) -> (i32, i32, i32) {
    %c0_i32 = arith.constant 0 : i32
    %c0_i32_0 = arith.constant 0 : i32
    %c0_i32_1 = arith.constant 0 : i32
    return %arg1, %c0_i32, %c0_i32_0 : i32, i32, i32
  }
  func.func @transform_5(%arg0: i32, %arg1: i32) -> (i32, i32, i32) {
    %c0_i32 = arith.constant 0 : i32
    %c0_i32_0 = arith.constant 0 : i32
    %c0_i32_1 = arith.constant 0 : i32
    return %arg1, %c0_i32, %c0_i32_0 : i32, i32, i32
  }
  func.func @transform_6(%arg0: i32, %arg1: i32) -> (i32, i32, i32) {
    %c0_i32 = arith.constant 0 : i32
    %c0_i32_0 = arith.constant 0 : i32
    %c0_i32_1 = arith.constant 0 : i32
    return %arg1, %c0_i32, %c0_i32_0 : i32, i32, i32
  }
  func.func @transform_7(%arg0: i32, %arg1: i32) -> (i32, i32, i32) {
    %c0_i32 = arith.constant 0 : i32
    %c0_i32_0 = arith.constant 0 : i32
    %c0_i32_1 = arith.constant 0 : i32
    return %arg1, %c0_i32, %c0_i32_0 : i32, i32, i32
  }
  func.func @transform_8(%arg0: i32, %arg1: i32) -> (i32, i32, i32) {
    %c0_i32 = arith.constant 0 : i32
    %c0_i32_0 = arith.constant 0 : i32
    %c0_i32_1 = arith.constant 0 : i32
    return %arg1, %c0_i32, %c0_i32_0 : i32, i32, i32
  }
  func.func @transform_9(%arg0: i32, %arg1: i32) -> (i32, i32) {
    %c0_i32 = arith.constant 0 : i32
    %c0_i32_0 = arith.constant 0 : i32
    %c0_i32_1 = arith.constant 0 : i32
    return %c0_i32, %c0_i32_0 : i32, i32
  }
  func.func @transform_10(%arg0: i32, %arg1: i32) -> (i32, i32) {
    %c0_i32 = arith.constant 0 : i32
    %c0_i32_0 = arith.constant 0 : i32
    %c0_i32_1 = arith.constant 0 : i32
    return %c0_i32, %c0_i32_0 : i32, i32
  }
  func.func @transform_11(%arg0: i32, %arg1: i32) -> (i32, i32) {
    %c0_i32 = arith.constant 0 : i32
    %c0_i32_0 = arith.constant 0 : i32
    return %arg0, %c0_i32 : i32, i32
  }
}

</mosaic_0001>

<llo_original>
// kernel: tpu_custom_call.1
$region0: #{tpu_custom_call.1}
  #allocation0 [shape = 'u32[]', space=smem, size = 0x4, offset = 0x4, fixed_abs, tag = 'smem constant byte address 0x4 - core index']
  #allocation1 [shape = 'u32[144,128]{1,0:T(1,128)}', space=vmem, size = 0x12000, scoped, tag = 'internal scratch']
  #allocation2 [shape = 'f32[8,32]{1,0:T(8,128)}', space=vmem, size = 0x1000, scoped, tag = 'scratch operand']
  %s0 = inlined_call_operand.hbm [shape: f32[16,32], index: 0, kind: input, shape index: {}]
  %s1 = inlined_call_operand.hbm [shape: f32[2,1,8], index: 1, kind: input, shape index: {}]
  %s2 = inlined_call_operand.hbm [shape: f32[1,32], index: 2, kind: input, shape index: {}]
  %s3 = inlined_call_operand.hbm [shape: f32[1,32], index: 3, kind: input, shape index: {}]
  %s4 = inlined_call_operand.vmem [shape: bf16[2,32,96], index: 4, kind: input, shape index: {}]
  %s5 = inlined_call_operand.vmem [shape: bf16[2,32,32], index: 5, kind: input, shape index: {}]
  %s6 = inlined_call_operand.vmem [shape: bf16[2,32,64], index: 6, kind: input, shape index: {}]
  %s7 = inlined_call_operand.vmem [shape: bf16[2,64,32], index: 7, kind: input, shape index: {}]
  %s8 = inlined_call_operand.hbm [shape: f32[2,8,128], index: 8, kind: input, shape index: {}]
  %s9 = inlined_call_operand.vmem [shape: bf16[32,128], index: 9, kind: input, shape index: {}]
  %s10 = inlined_call_operand.vmem [shape: f32[1,128], index: 10, kind: input, shape index: {}]
  %s11 = inlined_call_operand.hbm [shape: f32[16,128], index: 11, kind: output, shape index: {}]
  %s12 = sld [smem:[#allocation0]]
  $region105: #{tpu_custom_call.1} parent=0
    _
  %s14 = ssub.s32 1, %s12
  %s15 = scalar_select 0, %s14, %s12
  $region1: #{tpu_custom_call.1} parent=0
    #allocation3 [shape = 'u8[8192]{0}', space=vmem, size = 0x2000, scoped, tag = 'input window, operand 0']
    #allocation4 [shape = 's32[2]{0}', space=sflag, size = 0x8, scoped, tag = 'scoped memory for tpu_custom_call.1']
    #allocation5 [shape = 's32[2]{0}', space=sflag, size = 0x8, scoped, tag = 'scoped memory for tpu_custom_call.1']
    #allocation6 [shape = 'u8[1024]{0}', space=vmem, size = 0x400, scoped, tag = 'input window, operand 1']
    #allocation7 [shape = 's32[2]{0}', space=sflag, size = 0x8, scoped, tag = 'scoped memory for tpu_custom_call.1']
    #allocation8 [shape = 'u8[512]{0}', space=vmem, size = 0x400, scoped, tag = 'input window, operand 2, single buffered']
    #allocation9 [shape = 'u8[512]{0}', space=vmem, size = 0x400, scoped, tag = 'input window, operand 3, single buffered']
    #allocation10 [shape = 's32[1]{0}', space=sflag, size = 0x4, scoped, tag = 'scoped memory for tpu_custom_call.1']
    #allocation11 [shape = 'u8[8192]{0}', space=vmem, size = 0x2000, scoped, tag = 'input window, operand 8']
    #allocation12 [shape = 'u8[8192]{0}', space=vmem, size = 0x2000, scoped, tag = 'output window, operand 0']
    %16 = vsyncpa [#allocation4], 0
    %s17 = scalar_lea.sflag [#allocation4], 1
    %18 = vsyncpa %s17, 0
    %19 = vsyncpa [#allocation7], 0
    %s20 = scalar_lea.sflag [#allocation7], 1
    %21 = vsyncpa %s20, 0
    %22 = vsyncpa [#allocation10], 0
    %23 = vsyncpa [#allocation5], 0
    %s24 = scalar_lea.sflag [#allocation5], 1
    %25 = vsyncpa %s24, 0
    loop: start=0, step=1, limit=6
    $region2: #{tpu_custom_call.1} parent=1 // loop_pre_header
      _
    $region3: #{tpu_custom_call.1} parent=1 // loop_header
      %s27 = sphi 0, %s31
      %p28 = scmp.ge.s32.totalorder %s27, 6
      %s34 = sphi 0, %s46
      %s35 = sphi 0, %s42
      %s36 = sphi 0, %s34
      %s37 = sphi 0, %s35
      %s38 = sphi 0, %s36
      %s39 = sphi 0, %s37
      %s49 = sphi 0, %s51
      %s52 = sphi 0, %s49
      %s53 = sphi 0, %s52
      %s69 = sphi 0, %s53
      %s75 = sphi 0, %s77
      %s78 = sphi 0, %s75
      %s79 = sphi 0, %s78
      %s95 = sphi 0, %s79
      %s99 = sphi 0, %s99
      %s101 = sphi 0, %s99
      %s102 = sphi 0, %s101
      %s116 = sphi 0, %s102
      %s120 = sphi 0, %s120
      %s122 = sphi 0, %s120
      %s123 = sphi 0, %s122
      %s137 = sphi 0, %s123
      %s143 = sphi 0, %s145
      %s146 = sphi 0, %s143
      %s147 = sphi 0, %s146
      %s163 = sphi 0, %s147
      %s169 = sphi 0, %s171
      %s172 = sphi 0, %s169
      %s173 = sphi 0, %s172
      %s189 = sphi 0, %s173
      %s195 = sphi 0, %s197
      %s198 = sphi 0, %s195
      %s199 = sphi 0, %s198
      %s215 = sphi 0, %s199
      %s221 = sphi 0, %s223
      %s224 = sphi 0, %s221
      %s225 = sphi 0, %s224
      %s241 = sphi 0, %s225
      %s247 = sphi 0, %s249
      %s250 = sphi 0, %s247
      %s251 = sphi 0, %s250
      %s267 = sphi 0, %s251
      %s271 = sphi 0, %s271
      %s273 = sphi 0, %s271
      %s274 = sphi 0, %s273
      %s288 = sphi 0, %s274
      %s292 = sphi 0, %s292
      %s294 = sphi 0, %s292
      %s295 = sphi 0, %s294
      %s309 = sphi 0, %s295
      %s315 = sphi 0, %s317
      %s318 = sphi 0, %s315
      %s319 = sphi 0, %s318
      %s335 = sphi 0, %s319
    $region4: #{tpu_custom_call.1} parent=1 // loop_header_branch
      %30 = sbr.rel (%p28) target = $region8
    $region5: #{tpu_custom_call.1} parent=1 // loop_body
      %s32 = ssub.s32 %s27, 1
      %s33 = ssub.s32 %s27, 2
      %s40 = sadd.s32 1, %s35
      %p41 = scmp.ge.s32.totalorder %s40, 2
      %s42 = scalar_select %p41, 0, %s40
      %s43 = sadd.s32 1, %s34
      %s44 = scalar_select %p41, %s43, %s34
      %p45 = scmp.ge.s32.totalorder %s44, 2
      %s46 = scalar_select %p45, 0, %s44
      %s47 = ssub.s32 %s34, %s46
      %p48 = scmp.eq.s32.totalorder %s47, 0
      %s50 = sadd.s32 %s49, 1
      %s51 = scalar_select %p48, %s49, %s50
      %p54 = pneg %p48
      %p55 = scmp.eq.s32.totalorder %s27, 3
      %p56 = por %p54, %p55
      %p57 = scmp.ne.s32.totalorder %s49, %s52
      %p58 = scmp.eq.s32.totalorder %s27, 0
      %p59 = por %p57, %p58
      %p60 = scmp.ne.s32.totalorder %s49, %s52
      %p61 = scmp.eq.s32.totalorder %s32, 3
      %p62 = por %p60, %p61
      %p63 = scmp.ne.s32.totalorder %s52, %s53
      %p64 = scmp.eq.s32.totalorder %s32, 0
      %p65 = por %p63, %p64
      %p66 = scmp.ne.s32.totalorder %s52, %s53
      %p67 = scmp.eq.s32.totalorder %s33, 3
      %p68 = por %p66, %p67
      %p70 = scmp.ne.s32.totalorder %s53, %s69
      %p71 = scmp.eq.s32.totalorder %s33, 0
      %p72 = por %p70, %p71
      %s73 = ssub.s32 %s34, %s46
      %p74 = scmp.eq.s32.totalorder %s73, 0
      %s76 = sadd.s32 %s75, 1
      %s77 = scalar_select %p74, %s75, %s76
      %p80 = pneg %p74
      %p81 = scmp.eq.s32.totalorder %s27, 3
      %p82 = por %p80, %p81
      %p83 = scmp.ne.s32.totalorder %s75, %s78
      %p84 = scmp.eq.s32.totalorder %s27, 0
      %p85 = por %p83, %p84
      %p86 = scmp.ne.s32.totalorder %s75, %s78
      %p87 = scmp.eq.s32.totalorder %s32, 3
      %p88 = por %p86, %p87
      %p89 = scmp.ne.s32.totalorder %s78, %s79
      %p90 = scmp.eq.s32.totalorder %s32, 0
      %p91 = por %p89, %p90
      %p92 = scmp.ne.s32.totalorder %s78, %s79
      %p93 = scmp.eq.s32.totalorder %s33, 3
      %p94 = por %p92, %p93
      %p96 = scmp.ne.s32.totalorder %s79, %s95
      %p97 = scmp.eq.s32.totalorder %s33, 0
      %p98 = por %p96, %p97
      %s100 = sadd.s32 %s99, 1
      %p103 = scmp.eq.s32.totalorder %s27, 3
      %p104 = scmp.ne.s32.totalorder %s99, %s101
      %p105 = scmp.eq.s32.totalorder %s27, 0
      %p106 = por %p104, %p105
      %p107 = scmp.ne.s32.totalorder %s99, %s101
      %p108 = scmp.eq.s32.totalorder %s32, 3
      %p109 = por %p107, %p108
      %p110 = scmp.ne.s32.totalorder %s101, %s102
      %p111 = scmp.eq.s32.totalorder %s32, 0
      %p112 = por %p110, %p111
      %p113 = scmp.ne.s32.totalorder %s101, %s102
      %p114 = scmp.eq.s32.totalorder %s33, 3
      %p115 = por %p113, %p114
      %p117 = scmp.ne.s32.totalorder %s102, %s116
      %p118 = scmp.eq.s32.totalorder %s33, 0
      %p119 = por %p117, %p118
      %s121 = sadd.s32 %s120, 1
      %p124 = scmp.eq.s32.totalorder %s27, 3
      %p125 = scmp.ne.s32.totalorder %s120, %s122
      %p126 = scmp.eq.s32.totalorder %s27, 0
      %p127 = por %p125, %p126
      %p128 = scmp.ne.s32.totalorder %s120, %s122
      %p129 = scmp.eq.s32.totalorder %s32, 3
      %p130 = por %p128, %p129
      %p131 = scmp.ne.s32.totalorder %s122, %s123
      %p132 = scmp.eq.s32.totalorder %s32, 0
      %p133 = por %p131, %p132
      %p134 = scmp.ne.s32.totalorder %s122, %s123
      %p135 = scmp.eq.s32.totalorder %s33, 3
      %p136 = por %p134, %p135
      %p138 = scmp.ne.s32.totalorder %s123, %s137
      %p139 = scmp.eq.s32.totalorder %s33, 0
      %p140 = por %p138, %p139
      %s141 = ssub.s32 %s35, %s42
      %p142 = scmp.eq.s32.totalorder %s141, 0
      %s144 = sadd.s32 %s143, 1
      %s145 = scalar_select %p142, %s143, %s144
      %p148 = pneg %p142
      %p149 = scmp.eq.s32.totalorder %s27, 3
      %p150 = por %p148, %p149
      %p151 = scmp.ne.s32.totalorder %s143, %s146
      %p152 = scmp.eq.s32.totalorder %s27, 0
      %p153 = por %p151, %p152
      %p154 = scmp.ne.s32.totalorder %s143, %s146
      %p155 = scmp.eq.s32.totalorder %s32, 3
      %p156 = por %p154, %p155
      %p157 = scmp.ne.s32.totalorder %s146, %s147
      %p158 = scmp.eq.s32.totalorder %s32, 0
      %p159 = por %p157, %p158
      %p160 = scmp.ne.s32.totalorder %s146, %s147
      %p161 = scmp.eq.s32.totalorder %s33, 3
      %p162 = por %p160, %p161
      %p164 = scmp.ne.s32.totalorder %s147, %s163
      %p165 = scmp.eq.s32.totalorder %s33, 0
      %p166 = por %p164, %p165
      %s167 = ssub.s32 %s35, %s42
      %p168 = scmp.eq.s32.totalorder %s167, 0
      %s170 = sadd.s32 %s169, 1
      %s171 = scalar_select %p168, %s169, %s170
      %p174 = pneg %p168
      %p175 = scmp.eq.s32.totalorder %s27, 3
      %p176 = por %p174, %p175
      %p177 = scmp.ne.s32.totalorder %s169, %s172
      %p178 = scmp.eq.s32.totalorder %s27, 0
      %p179 = por %p177, %p178
      %p180 = scmp.ne.s32.totalorder %s169, %s172
      %p181 = scmp.eq.s32.totalorder %s32, 3
      %p182 = por %p180, %p181
      %p183 = scmp.ne.s32.totalorder %s172, %s173
      %p184 = scmp.eq.s32.totalorder %s32, 0
      %p185 = por %p183, %p184
      %p186 = scmp.ne.s32.totalorder %s172, %s173
      %p187 = scmp.eq.s32.totalorder %s33, 3
      %p188 = por %p186, %p187
      %p190 = scmp.ne.s32.totalorder %s173, %s189
      %p191 = scmp.eq.s32.totalorder %s33, 0
      %p192 = por %p190, %p191
      %s193 = ssub.s32 %s35, %s42
      %p194 = scmp.eq.s32.totalorder %s193, 0
      %s196 = sadd.s32 %s195, 1
      %s197 = scalar_select %p194, %s195, %s196
      %p200 = pneg %p194
      %p201 = scmp.eq.s32.totalorder %s27, 3
      %p202 = por %p200, %p201
      %p203 = scmp.ne.s32.totalorder %s195, %s198
      %p204 = scmp.eq.s32.totalorder %s27, 0
      %p205 = por %p203, %p204
      %p206 = scmp.ne.s32.totalorder %s195, %s198
      %p207 = scmp.eq.s32.totalorder %s32, 3
      %p208 = por %p206, %p207
      %p209 = scmp.ne.s32.totalorder %s198, %s199
      %p210 = scmp.eq.s32.totalorder %s32, 0
      %p211 = por %p209, %p210
      %p212 = scmp.ne.s32.totalorder %s198, %s199
      %p213 = scmp.eq.s32.totalorder %s33, 3
      %p214 = por %p212, %p213
      %p216 = scmp.ne.s32.totalorder %s199, %s215
      %p217 = scmp.eq.s32.totalorder %s33, 0
      %p218 = por %p216, %p217
      %s219 = ssub.s32 %s35, %s42
      %p220 = scmp.eq.s32.totalorder %s219, 0
      %s222 = sadd.s32 %s221, 1
      %s223 = scalar_select %p220, %s221, %s222
      %p226 = pneg %p220
      %p227 = scmp.eq.s32.totalorder %s27, 3
      %p228 = por %p226, %p227
      %p229 = scmp.ne.s32.totalorder %s221, %s224
      %p230 = scmp.eq.s32.totalorder %s27, 0
      %p231 = por %p229, %p230
      %p232 = scmp.ne.s32.totalorder %s221, %s224
      %p233 = scmp.eq.s32.totalorder %s32, 3
      %p234 = por %p232, %p233
      %p235 = scmp.ne.s32.totalorder %s224, %s225
      %p236 = scmp.eq.s32.totalorder %s32, 0
      %p237 = por %p235, %p236
      %p238 = scmp.ne.s32.totalorder %s224, %s225
      %p239 = scmp.eq.s32.totalorder %s33, 3
      %p240 = por %p238, %p239
      %p242 = scmp.ne.s32.totalorder %s225, %s241
      %p243 = scmp.eq.s32.totalorder %s33, 0
      %p244 = por %p242, %p243
      %s245 = ssub.s32 %s35, %s42
      %p246 = scmp.eq.s32.totalorder %s245, 0
      %s248 = sadd.s32 %s247, 1
      %s249 = scalar_select %p246, %s247, %s248
      %p252 = pneg %p246
      %p253 = scmp.eq.s32.totalorder %s27, 3
      %p254 = por %p252, %p253
      %p255 = scmp.ne.s32.totalorder %s247, %s250
      %p256 = scmp.eq.s32.totalorder %s27, 0
      %p257 = por %p255, %p256
      %p258 = scmp.ne.s32.totalorder %s247, %s250
      %p259 = scmp.eq.s32.totalorder %s32, 3
      %p260 = por %p258, %p259
      %p261 = scmp.ne.s32.totalorder %s250, %s251
      %p262 = scmp.eq.s32.totalorder %s32, 0
      %p263 = por %p261, %p262
      %p264 = scmp.ne.s32.totalorder %s250, %s251
      %p265 = scmp.eq.s32.totalorder %s33, 3
      %p266 = por %p264, %p265
      %p268 = scmp.ne.s32.totalorder %s251, %s267
      %p269 = scmp.eq.s32.totalorder %s33, 0
      %p270 = por %p268, %p269
      %s272 = sadd.s32 %s271, 1
      %p275 = scmp.eq.s32.totalorder %s27, 3
      %p276 = scmp.ne.s32.totalorder %s271, %s273
      %p277 = scmp.eq.s32.totalorder %s27, 0
      %p278 = por %p276, %p277
      %p279 = scmp.ne.s32.totalorder %s271, %s273
      %p280 = scmp.eq.s32.totalorder %s32, 3
      %p281 = por %p279, %p280
      %p282 = scmp.ne.s32.totalorder %s273, %s274
      %p283 = scmp.eq.s32.totalorder %s32, 0
      %p284 = por %p282, %p283
      %p285 = scmp.ne.s32.totalorder %s273, %s274
      %p286 = scmp.eq.s32.totalorder %s33, 3
      %p287 = por %p285, %p286
      %p289 = scmp.ne.s32.totalorder %s274, %s288
      %p290 = scmp.eq.s32.totalorder %s33, 0
      %p291 = por %p289, %p290
      %s293 = sadd.s32 %s292, 1
      %p296 = scmp.eq.s32.totalorder %s27, 3
      %p297 = scmp.ne.s32.totalorder %s292, %s294
      %p298 = scmp.eq.s32.totalorder %s27, 0
      %p299 = por %p297, %p298
      %p300 = scmp.ne.s32.totalorder %s292, %s294
      %p301 = scmp.eq.s32.totalorder %s32, 3
      %p302 = por %p300, %p301
      %p303 = scmp.ne.s32.totalorder %s294, %s295
      %p304 = scmp.eq.s32.totalorder %s32, 0
      %p305 = por %p303, %p304
      %p306 = scmp.ne.s32.totalorder %s294, %s295
      %p307 = scmp.eq.s32.totalorder %s33, 3
      %p308 = por %p306, %p307
      %p310 = scmp.ne.s32.totalorder %s295, %s309
      %p311 = scmp.eq.s32.totalorder %s33, 0
      %p312 = por %p310, %p311
      %s313 = ssub.s32 %s34, %s46
      %p314 = scmp.eq.s32.totalorder %s313, 0
      %s316 = sadd.s32 %s315, 1
      %s317 = scalar_select %p314, %s315, %s316
      %p320 = pneg %p314
      %p321 = scmp.eq.s32.totalorder %s27, 3
      %p322 = por %p320, %p321
      %p323 = scmp.ne.s32.totalorder %s315, %s318
      %p324 = scmp.eq.s32.totalorder %s27, 0
      %p325 = por %p323, %p324
      %p326 = scmp.ne.s32.totalorder %s315, %s318
      %p327 = scmp.eq.s32.totalorder %s32, 3
      %p328 = por %p326, %p327
      %p329 = scmp.ne.s32.totalorder %s318, %s319
      %p330 = scmp.eq.s32.totalorder %s32, 0
      %p331 = por %p329, %p330
      %p332 = scmp.ne.s32.totalorder %s318, %s319
      %p333 = scmp.eq.s32.totalorder %s33, 3
      %p334 = por %p332, %p333
      %p336 = scmp.ne.s32.totalorder %s319, %s335
      %p337 = scmp.eq.s32.totalorder %s33, 0
      %p338 = por %p336, %p337
      %p339 = scmp.le.s32.totalorder 1, %s27
      %p340 = scmp.lt.s32.totalorder %s27, 5
      %p341 = pnand %p339, %p340
      %p342 = pneg %p341
      // Predicated region
      $region9: #{tpu_custom_call.1} parent=5 // pred_check
        _
      $region10: #{tpu_custom_call.1} parent=5 // pred_check_branch
        %344 = sbr.rel (%p341) target = $region12
      $region11: #{tpu_custom_call.1} parent=5 // pred_region
        %s345 = ssub.s32 %s27, 1
        // Predicated region
        $region13: #{tpu_custom_call.1} parent=11 // pred_check
          %p346 = pneg %p112
        $region14: #{tpu_custom_call.1} parent=11 // pred_check_branch
          %348 = sbr.rel (%p346) target = $region16
        $region15: #{tpu_custom_call.1} parent=11 // pred_region
          %s350 = ssub.s32 16, 16
          %351 = vsyncadd [#allocation7], %s350
          %s353 = sshll.u32 [#allocation8], 4
          %s354 = int_to_ptr.vmem [resolvable:$true] %s353
          %356 = dma.hbm_to_vmem [thread:$0]  %s2, 16, %s354, [#allocation7]
        $region16: #{tpu_custom_call.1} parent=11 // pred_fallthru
          _
        // Predicated region
        $region17: #{tpu_custom_call.1} parent=11 // pred_check
          %p357 = pneg %p133
        $region18: #{tpu_custom_call.1} parent=11 // pred_check_branch
          %359 = sbr.rel (%p357) target = $region20
        $region19: #{tpu_custom_call.1} parent=11 // pred_region
          %s361 = ssub.s32 16, 16
          %362 = vsyncadd [#allocation10], %s361
          %s364 = sshll.u32 [#allocation9], 4
          %s365 = int_to_ptr.vmem [resolvable:$true] %s364
          %367 = dma.hbm_to_vmem [thread:$0]  %s3, 16, %s365, [#allocation10]
        $region20: #{tpu_custom_call.1} parent=11 // pred_fallthru
          _
        // Predicated region
        $region21: #{tpu_custom_call.1} parent=11 // pred_check
          %p368 = pneg %p284
        $region22: #{tpu_custom_call.1} parent=11 // pred_check_branch
          %370 = sbr.rel (%p368) target = $region24
        $region23: #{tpu_custom_call.1} parent=11 // pred_region
          _
        $region24: #{tpu_custom_call.1} parent=11 // pred_fallthru
          _
        // Predicated region
        $region25: #{tpu_custom_call.1} parent=11 // pred_check
          %p371 = pneg %p305
        $region26: #{tpu_custom_call.1} parent=11 // pred_check_branch
          %373 = sbr.rel (%p371) target = $region28
        $region27: #{tpu_custom_call.1} parent=11 // pred_region
          _
        $region28: #{tpu_custom_call.1} parent=11 // pred_fallthru
          _
      $region12: #{tpu_custom_call.1} parent=5 // pred_fallthru
        _
      %p374 = scmp.lt.s32.totalorder %s27, 4
      // Predicated region
      $region29: #{tpu_custom_call.1} parent=5 // pred_check
        %p375 = pneg %p374
      $region30: #{tpu_custom_call.1} parent=5 // pred_check_branch
        %377 = sbr.rel (%p375) target = $region32
      $region31: #{tpu_custom_call.1} parent=5 // pred_region
        // Predicated region
        $region33: #{tpu_custom_call.1} parent=31 // pred_check
          %p378 = pneg %p59
        $region34: #{tpu_custom_call.1} parent=31 // pred_check_branch
          %380 = sbr.rel (%p378) target = $region36
        $region35: #{tpu_custom_call.1} parent=31 // pred_region
          %s381 = sand.u32 %s27, 1
          %s382 = scalar_lea.sflag [#allocation4], %s381
          %s383 = sand.u32 %s49, 1
          %s384 = smul.addr %s383, 8
          %s385 = scalar_lea.vmem [#allocation3], %s384
          %s387 = ssub.s32 128, 128
          %388 = vsyncadd %s382, %s387
          %s389 = smul.addr %s34, 128
          %s390 = scalar_lea.hbm %s0, %s389
          %s392 = sshll.u32 %s385, 4
          %s393 = int_to_ptr.vmem [resolvable:$true] %s392
          %395 = dma.hbm_to_vmem [thread:$0]  %s390, 128, %s393, %s382
        $region36: #{tpu_custom_call.1} parent=31 // pred_fallthru
          _
        // Predicated region
        $region37: #{tpu_custom_call.1} parent=31 // pred_check
          %p396 = pneg %p85
        $region38: #{tpu_custom_call.1} parent=31 // pred_check_branch
          %398 = sbr.rel (%p396) target = $region40
        $region39: #{tpu_custom_call.1} parent=31 // pred_region
          %s399 = sand.u32 %s27, 1
          %s400 = scalar_lea.sflag [#allocation7], %s399
          %s401 = sand.u32 %s75, 1
          %s402 = scalar_lea.vmem [#allocation6], %s401
          %s404 = ssub.s32 16, 16
          %405 = vsyncadd %s400, %s404
          %s406 = smul.addr %s34, 16
          %s407 = scalar_lea.hbm %s1, %s406
          %s409 = sshll.u32 %s402, 4
          %s410 = int_to_ptr.vmem [resolvable:$true] %s409
          %412 = dma.hbm_to_vmem [thread:$0]  %s407, 16, %s410, %s400
        $region40: #{tpu_custom_call.1} parent=31 // pred_fallthru
          _
        // Predicated region
        $region41: #{tpu_custom_call.1} parent=31 // pred_check
          %p413 = pneg %p153
        $region42: #{tpu_custom_call.1} parent=31 // pred_check_branch
          %415 = sbr.rel (%p413) target = $region44
        $region43: #{tpu_custom_call.1} parent=31 // pred_region
          %p416 = scmp.lt.s32.totalorder %s35, 1
          %s417 = scalar_select %p416, %s35, 1
          %s418 = smul.addr %s417, 4
          %s419 = smul.addr %s418, 4
          %s420 = scalar_lea.vmem %s4, %s419
        $region44: #{tpu_custom_call.1} parent=31 // pred_fallthru
          _
        // Predicated region
        $region45: #{tpu_custom_call.1} parent=31 // pred_check
          %p421 = pneg %p179
        $region46: #{tpu_custom_call.1} parent=31 // pred_check_branch
          %423 = sbr.rel (%p421) target = $region48
        $region47: #{tpu_custom_call.1} parent=31 // pred_region
          %p424 = scmp.lt.s32.totalorder %s35, 1
          %s425 = scalar_select %p424, %s35, 1
          %s426 = smul.addr %s425, 4
          %s427 = smul.addr %s426, 4
          %s428 = scalar_lea.vmem %s5, %s427
        $region48: #{tpu_custom_call.1} parent=31 // pred_fallthru
          _
        // Predicated region
        $region49: #{tpu_custom_call.1} parent=31 // pred_check
          %p429 = pneg %p205
        $region50: #{tpu_custom_call.1} parent=31 // pred_check_branch
          %431 = sbr.rel (%p429) target = $region52
        $region51: #{tpu_custom_call.1} parent=31 // pred_region
          %p432 = scmp.lt.s32.totalorder %s35, 1
          %s433 = scalar_select %p432, %s35, 1
          %s434 = smul.addr %s433, 4
          %s435 = smul.addr %s434, 4
          %s436 = scalar_lea.vmem %s6, %s435
        $region52: #{tpu_custom_call.1} parent=31 // pred_fallthru
          _
        // Predicated region
        $region53: #{tpu_custom_call.1} parent=31 // pred_check
          %p437 = pneg %p231
        $region54: #{tpu_custom_call.1} parent=31 // pred_check_branch
          %439 = sbr.rel (%p437) target = $region56
        $region55: #{tpu_custom_call.1} parent=31 // pred_region
          %p440 = scmp.lt.s32.totalorder %s35, 1
          %s441 = scalar_select %p440, %s35, 1
          %s442 = smul.addr %s441, 8
          %s443 = smul.addr %s442, 4
          %s444 = scalar_lea.vmem %s7, %s443
        $region56: #{tpu_custom_call.1} parent=31 // pred_fallthru
          _
        // Predicated region
        $region57: #{tpu_custom_call.1} parent=31 // pred_check
          %p445 = pneg %p257
        $region58: #{tpu_custom_call.1} parent=31 // pred_check_branch
          %447 = sbr.rel (%p445) target = $region60
        $region59: #{tpu_custom_call.1} parent=31 // pred_region
          %s448 = sand.u32 %s27, 1
          %s449 = scalar_lea.sflag [#allocation4], %s448
          %s450 = sand.u32 %s247, 1
          %s451 = smul.addr %s450, 8
          %s452 = scalar_lea.vmem [#allocation11], %s451
          %s454 = ssub.s32 128, 128
          %455 = vsyncadd %s449, %s454
          %s456 = smul.addr %s35, 128
          %s457 = scalar_lea.hbm %s8, %s456
          %s459 = sshll.u32 %s452, 4
          %s460 = int_to_ptr.vmem [resolvable:$true] %s459
          %462 = dma.hbm_to_vmem [thread:$0]  %s457, 128, %s460, %s449
        $region60: #{tpu_custom_call.1} parent=31 // pred_fallthru
          _
      $region32: #{tpu_custom_call.1} parent=5 // pred_fallthru
        _
      %p463 = scmp.le.s32.totalorder 1, %s27
      %p464 = scmp.lt.s32.totalorder %s27, 5
      %p465 = pnand %p463, %p464
      %p466 = pneg %p465
      // Predicated region
      $region61: #{tpu_custom_call.1} parent=5 // pred_check
        _
      $region62: #{tpu_custom_call.1} parent=5 // pred_check_branch
        %468 = sbr.rel (%p465) target = $region64
      $region63: #{tpu_custom_call.1} parent=5 // pred_region
        %s469 = ssub.s32 %s27, 1
        %s470 = sand.u32 %s32, 1
        %s471 = scalar_lea.sflag [#allocation4], %s470
        %s472 = sand.u32 %s52, 1
        %s473 = smul.addr %s472, 8
        %s474 = scalar_lea.vmem [#allocation3], %s473
        // Predicated region
        $region65: #{tpu_custom_call.1} parent=63 // pred_check
          %p475 = pneg %p65
        $region66: #{tpu_custom_call.1} parent=63 // pred_check_branch
          %477 = sbr.rel (%p475) target = $region68
        $region67: #{tpu_custom_call.1} parent=63 // pred_region
          %478 = dma.done %s471, 128
        $region68: #{tpu_custom_call.1} parent=63 // pred_fallthru
          _
        %s479 = sand.u32 %s32, 1
        %s480 = scalar_lea.sflag [#allocation7], %s479
        %s481 = sand.u32 %s78, 1
        %s482 = scalar_lea.vmem [#allocation6], %s481
        // Predicated region
        $region69: #{tpu_custom_call.1} parent=63 // pred_check
          %p483 = pneg %p91
        $region70: #{tpu_custom_call.1} parent=63 // pred_check_branch
          %485 = sbr.rel (%p483) target = $region72
        $region71: #{tpu_custom_call.1} parent=63 // pred_region
          %486 = dma.done %s480, 16
        $region72: #{tpu_custom_call.1} parent=63 // pred_fallthru
          _
        // Predicated region
        $region73: #{tpu_custom_call.1} parent=63 // pred_check
          %p487 = pneg %p112
        $region74: #{tpu_custom_call.1} parent=63 // pred_check_branch
          %489 = sbr.rel (%p487) target = $region76
        $region75: #{tpu_custom_call.1} parent=63 // pred_region
          %490 = dma.done [#allocation7], 16
        $region76: #{tpu_custom_call.1} parent=63 // pred_fallthru
          _
        // Predicated region
        $region77: #{tpu_custom_call.1} parent=63 // pred_check
          %p491 = pneg %p133
        $region78: #{tpu_custom_call.1} parent=63 // pred_check_branch
          %493 = sbr.rel (%p491) target = $region80
        $region79: #{tpu_custom_call.1} parent=63 // pred_region
          %494 = dma.done [#allocation10], 16
        $region80: #{tpu_custom_call.1} parent=63 // pred_fallthru
          _
        %s495 = sand.u32 %s32, 1
        %s496 = scalar_lea.sflag [#allocation4], %s495
        %s497 = sand.u32 %s250, 1
        %s498 = smul.addr %s497, 8
        %s499 = scalar_lea.vmem [#allocation11], %s498
        // Predicated region
        $region81: #{tpu_custom_call.1} parent=63 // pred_check
          %p500 = pneg %p263
        $region82: #{tpu_custom_call.1} parent=63 // pred_check_branch
          %502 = sbr.rel (%p500) target = $region84
        $region83: #{tpu_custom_call.1} parent=63 // pred_region
          %503 = dma.done %s496, 128
        $region84: #{tpu_custom_call.1} parent=63 // pred_fallthru
          _
        %s504 = sand.u32 %s32, 1
        %s505 = scalar_lea.sflag [#allocation4], %s504
        %s506 = sand.u32 %s52, 1
        %s507 = smul.addr %s506, 8
        %s508 = scalar_lea.vmem [#allocation3], %s507
        %p509 = pneg %p65
        %p510 = pneg %p62
        %s511 = sand.u32 %s32, 1
        %s512 = scalar_lea.sflag [#allocation7], %s511
        %s513 = sand.u32 %s78, 1
        %s514 = scalar_lea.vmem [#allocation6], %s513
        %p515 = pneg %p91
        %p516 = pneg %p88
        %p517 = pneg %p112
        %p518 = pneg %p109
        %p519 = pneg %p133
        %p520 = pneg %p130
        %p521 = scmp.lt.s32.totalorder %s37, 1
        %s522 = scalar_select %p521, %s37, 1
        %s523 = smul.addr %s522, 4
        %s524 = smul.addr %s523, 4
        %s525 = scalar_lea.vmem %s4, %s524
        %p526 = pneg %p159
        %p527 = pneg %p156
        %p528 = scmp.lt.s32.totalorder %s37, 1
        %s529 = scalar_select %p528, %s37, 1
        %s530 = smul.addr %s529, 4
        %s531 = smul.addr %s530, 4
        %s532 = scalar_lea.vmem %s5, %s531
        %p533 = pneg %p185
        %p534 = pneg %p182
        %p535 = scmp.lt.s32.totalorder %s37, 1
        %s536 = scalar_select %p535, %s37, 1
        %s537 = smul.addr %s536, 4
        %s538 = smul.addr %s537, 4
        %s539 = scalar_lea.vmem %s6, %s538
        %p540 = pneg %p211
        %p541 = pneg %p208
        %p542 = scmp.lt.s32.totalorder %s37, 1
        %s543 = scalar_select %p542, %s37, 1
        %s544 = smul.addr %s543, 8
        %s545 = smul.addr %s544, 4
        %s546 = scalar_lea.vmem %s7, %s545
        %p547 = pneg %p237
        %p548 = pneg %p234
        %s549 = sand.u32 %s32, 1
        %s550 = scalar_lea.sflag [#allocation4], %s549
        %s551 = sand.u32 %s250, 1
        %s552 = smul.addr %s551, 8
        %s553 = scalar_lea.vmem [#allocation11], %s552
        %p554 = pneg %p263
        %p555 = pneg %p260
        %p556 = pneg %p284
        %p557 = pneg %p281
        %p558 = pneg %p305
        %p559 = pneg %p302
        %p560 = pneg %p331
        %p561 = pneg %p328
        %s562 = sand.u32 %s318, 1
        %s563 = scalar_lea.sflag [#allocation5], %s562
        %s564 = sand.u32 %s318, 1
        %s565 = smul.addr %s564, 8
        %s566 = scalar_lea.vmem [#allocation12], %s565
        %p567 = scmp.lt.s32.totalorder %s37, 1
        %s568 = scalar_select %p567, %s37, 1
        %s569 = smul.addr %s568, 4
        %s570 = smul.addr %s569, 4
        %s571 = scalar_lea.vmem %s4, %s570
        %p572 = scmp.lt.s32.totalorder %s37, 1
        %s573 = scalar_select %p572, %s37, 1
        %s574 = smul.addr %s573, 4
        %s575 = smul.addr %s574, 4
        %s576 = scalar_lea.vmem %s5, %s575
        %p577 = scmp.lt.s32.totalorder %s37, 1
        %s578 = scalar_select %p577, %s37, 1
        %s579 = smul.addr %s578, 4
        %s580 = smul.addr %s579, 4
        %s581 = scalar_lea.vmem %s6, %s580
        %p582 = scmp.lt.s32.totalorder %s37, 1
        %s583 = scalar_select %p582, %s37, 1
        %s584 = smul.addr %s583, 8
        %s585 = smul.addr %s584, 4
        %s586 = scalar_lea.vmem %s7, %s585
        %p588 = scmp.eq.s32.totalorder %s37, 0
        // Predicated region
        $region85: #{tpu_custom_call.1} parent=63 // pred_check
          %p589 = pneg %p588
        $region86: #{tpu_custom_call.1} parent=63 // pred_check_branch
          %591 = sbr.rel (%p589) target = $region88
        $region87: #{tpu_custom_call.1} parent=63 // pred_region
          %v592 = vld [vmem:[%s474] sm:$0xff]
          %v593 = vld [vmem:[#allocation8] sm:$0x1]
          %v594 = vld [vmem:[#allocation9] sm:$0x1]
          %vm595 = vcmask 261120
          %v596 = vsel %vm595, %v592, 0.0
          %597 = vadd.xlane.f32.xlu0 %v596
          %v598 = vpop.xlane.xlu0 %597
          %v599 = vrcp.pop 32.0
          %v600 = vmul.f32 %v598, %v599
          %v601 = vsub.f32 %v592, %v600
          %v602 = vmul.f32 %v601, %v601
          %v603 = vsel %vm595, %v602, 0.0
          %604 = vadd.xlane.f32.xlu0 %v603
          %v605 = vpop.xlane.xlu0 %604
          %v606 = vmul.f32 %v605, %v599
          %v607 = vadd.f32 %v606, 1e-12
          %v608 = vrsqrt.pop %v607
          %v609 = vmul.f32 %v601, %v608
          %v611 = vlaneseq
          %v612 = vshrl.u32 %v611, 7
          %v613 = vsub.s32 0, %v612
          %v614 = vrot.slane %v593, %v613
          %v616 = vmul.f32 %v609, %v614
          %v618 = vlaneseq
          %v619 = vshrl.u32 %v618, 7
          %v620 = vsub.s32 0, %v619
          %v621 = vrot.slane %v594, %v620
          %v623 = vadd.f32 %v616, %v621
          %624 = vst.msk [vmem:[#allocation2] sm:$0xff] %vm595, %v623
        $region88: #{tpu_custom_call.1} parent=63 // pred_fallthru
          _
        %v625 = vld [vmem:[#allocation2] sm:$0xff]
        %v626 = vld [vmem:[%s499] sm:$0xff]
        %v627 = vld [vmem:[%s482] sm:$0x1]
        %v628 = vpack.c.bf16 %v625, %v625
        %v629 = vld [vmem:[%s571] sm:$0xf]
        %v630 = vld [vmem:[%s571 + $0x4] sm:$0xf]
        %v631 = vld [vmem:[%s571 + $0x8] sm:$0xf]
        %v632 = vld [vmem:[%s571 + $0xc] sm:$0xf]
        %v633 = vlaneseq
        %v634 = vshrl.u32 %v633, 7
        %v635 = vsub.s32 0, %v634
        %v636 = vrot.slane %v626, %v635
        %v641 = vunpack.c.l.b16 %v629
        %v642 = vunpack.c.l.b16 %v630
        %v643 = vunpack.c.l.b16 %v631
        %v644 = vunpack.c.l.b16 %v632
        %v645 = vpack.c.b16 %v642, %v641
        %v646 = vpack.c.b16 %v644, %v643
        %vm649 = vcmask 261120
        %v651 = vsel %vm649, %v628, 0
        %653 = vmatprep.subr.bf16.mxu0 0
        %654 = vmatpush1.bf16.msra.mxu0 0
        %655 = vmatprep.subr.bf16.mxu0 0
        %656 = vmatpush1.bf16.msra.mxu0 0
        %657 = vmatprep.subr.bf16.mxu0 0
        %658 = vmatpush1.bf16.msra.mxu0 0
        %659 = vmatprep.subr.bf16.mxu0 0
        %660 = vmatpush1.bf16.msra.mxu0 0
        %661 = vmatprep.subr.bf16.mxu0 0
        %662 = vmatpush1.bf16.msra.mxu0 0
        %663 = vmatprep.subr.bf16.mxu0 0
        %664 = vmatpush1.bf16.msra.mxu0 0
        %665 = vmatprep.subr.bf16.mxu0 0
        %666 = vmatpush1.bf16.msra.mxu0 %v646
        %667 = vmatprep.subr.bf16.mxu0 0
        %668 = vmatpush1.bf16.msra.mxu0 %v645
        %669 = vmatprep.subr.bf16.mxu0 0
        %670 = vmatpush2.bf16.msra.mxu0 0
        %671 = vmatprep.subr.bf16.mxu0 0
        %672 = vmatpush2.bf16.msra.mxu0 0
        %673 = vmatprep.subr.bf16.mxu0 0
        %674 = vmatpush2.bf16.msra.mxu0 0
        %675 = vmatprep.subr.bf16.mxu0 0
        %676 = vmatpush2.bf16.msra.mxu0 0
        %677 = vmatprep.subr.bf16.mxu0 0
        %678 = vmatpush2.bf16.msra.mxu0 0
        %679 = vmatprep.subr.bf16.mxu0 0
        %680 = vmatpush2.bf16.msra.mxu0 0
        %681 = vmatprep.subr.bf16.mxu0 0
        %682 = vmatpush2.bf16.msra.mxu0 0
        %683 = vmatprep.subr.bf16.mxu0 0
        %684 = vmatpush2.bf16.msra.mxu0 0
        %685 = vmatprep.mubr.bf16.mxu0 0
        %686 = vmatmul.mubr.bf16.gmra.mxu0 %v651
        %v687 = vpop.f32.mrf.mxu0
        %v688 = vadd.f32 %v636, %v687
        %v689 = vpop.f32.mrf.mxu0
        %v690 = vpop.f32.mrf.mxu0
        %v691 = vpop.f32.mrf.mxu0
        %692 = vdwg.mxu0
        %v693 = vld [vmem:[%s576] sm:$0xf]
        %v694 = vld [vmem:[%s576 + $0x4] sm:$0xf]
        %v695 = vld [vmem:[%s576 + $0x8] sm:$0xf]
        %v696 = vld [vmem:[%s576 + $0xc] sm:$0xf]
        %v697 = vpack.c.bf16 %v688, %v688
        %v699 = vlaneseq
        %v700 = vshrl.u32 %v699, 7
        %v701 = vsub.s32 0, %v700
        %v702 = vrot.slane %v627, %v701
        %705 = vrot.lane.b32.xlu0 %v697, 96
        %v706 = vpop.permute.xlu0 %705
        %vm707 = vcmask 130048
        %v709 = vsel %vm707, %v697, 0
        %v712 = vsel %vm707, %v706, 0
        %714 = vmatprep.subr.bf16.mxu0 0
        %715 = vmatpush1.bf16.xpose.msra.mxu0 0
        %716 = vmatprep.subr.bf16.mxu0 0
        %717 = vmatpush1.bf16.xpose.msra.mxu0 0
        %718 = vmatprep.subr.bf16.mxu0 0
        %719 = vmatpush1.bf16.xpose.msra.mxu0 0
        %720 = vmatprep.subr.bf16.mxu0 0
        %721 = vmatpush1.bf16.xpose.msra.mxu0 0
        %722 = vmatprep.subr.bf16.mxu0 0
        %723 = vmatpush1.bf16.xpose.msra.mxu0 0
        %724 = vmatprep.subr.bf16.mxu0 0
        %725 = vmatpush1.bf16.xpose.msra.mxu0 0
        %726 = vmatprep.subr.bf16.mxu0 0
        %727 = vmatpush1.bf16.xpose.msra.mxu0 0
        %728 = vmatprep.subr.bf16.mxu0 0
        %729 = vmatpush1.bf16.xpose.msra.mxu0 %v712
        %730 = vmatprep.subr.bf16.mxu0 0
        %731 = vmatpush2.bf16.xpose.msra.mxu0 0
        %732 = vmatprep.subr.bf16.mxu0 0
        %733 = vmatpush2.bf16.xpose.msra.mxu0 0
        %734 = vmatprep.subr.bf16.mxu0 0
        %735 = vmatpush2.bf16.xpose.msra.mxu0 0
        %736 = vmatprep.subr.bf16.mxu0 0
        %737 = vmatpush2.bf16.xpose.msra.mxu0 0
        %738 = vmatprep.subr.bf16.mxu0 0
        %739 = vmatpush2.bf16.xpose.msra.mxu0 0
        %740 = vmatprep.subr.bf16.mxu0 0
        %741 = vmatpush2.bf16.xpose.msra.mxu0 0
        %742 = vmatprep.subr.bf16.mxu0 0
        %743 = vmatpush2.bf16.xpose.msra.mxu0 0
        %744 = vmatprep.subr.bf16.mxu0 0
        %745 = vmatpush2.bf16.xpose.msra.mxu0 0
        %746 = vmatprep.mubr.bf16.mxu0 0
        %747 = vmatmul.mubr.bf16.gmra.mxu0 %v709
        %v748 = vpop.f32.mrf.mxu0
        %v749 = vadd.f32 %v702, %v748
        %v750 = vpop.f32.mrf.mxu0
        %v751 = vpop.f32.mrf.mxu0
        %v752 = vpop.f32.mrf.mxu0
        %753 = vdwg.mxu0
        %vm754 = vcmask 64512
        %v755 = vsel %vm754, %v749, -inf
        %756 = vmax.xlane.f32.xlu0 %v755
        %v757 = vpop.xlane.xlu0 %756
        %v758 = vsub.f32 %v749, %v757
        %v759 = vmul.f32 %v758, 1.442695
        %v760 = vpow.pop %v759
        %v761 = vsel %vm754, %v760, 0.0
        %762 = vadd.xlane.f32.xlu0 %v761
        %v763 = vpop.xlane.xlu0 %762
        %v764 = vrcp.pop %v763
        %v765 = vmul.f32 %v760, %v764
        %v766 = vpack.c.bf16 %v765, %v765
        %767 = vrot.lane.b32.xlu0 %v697, 64
        %v768 = vpop.permute.xlu0 %767
        %v770 = vsel %vm754, %v766, 0
        %vm772 = vcmask 1043456
        %v774 = vsel %vm772, %v768, 0
        %776 = vmatprep.subr.bf16.mxu0 0
        %777 = vmatpush1.bf16.msra.mxu0 0
        %778 = vmatprep.subr.bf16.mxu0 0
        %779 = vmatpush1.bf16.msra.mxu0 0
        %780 = vmatprep.subr.bf16.mxu0 0
        %781 = vmatpush1.bf16.msra.mxu0 0
        %782 = vmatprep.subr.bf16.mxu0 0
        %783 = vmatpush1.bf16.msra.mxu0 0
        %784 = vmatprep.subr.bf16.mxu0 0
        %785 = vmatpush1.bf16.msra.mxu0 0
        %786 = vmatprep.subr.bf16.mxu0 0
        %787 = vmatpush1.bf16.msra.mxu0 0
        %788 = vmatprep.subr.bf16.mxu0 0
        %789 = vmatpush1.bf16.msra.mxu0 0
        %790 = vmatprep.subr.bf16.mxu0 0
        %791 = vmatpush1.bf16.msra.mxu0 %v774
        %792 = vmatprep.subr.bf16.mxu0 0
        %793 = vmatpush2.bf16.msra.mxu0 0
        %794 = vmatprep.subr.bf16.mxu0 0
        %795 = vmatpush2.bf16.msra.mxu0 0
        %796 = vmatprep.subr.bf16.mxu0 0
        %797 = vmatpush2.bf16.msra.mxu0 0
        %798 = vmatprep.subr.bf16.mxu0 0
        %799 = vmatpush2.bf16.msra.mxu0 0
        %800 = vmatprep.subr.bf16.mxu0 0
        %801 = vmatpush2.bf16.msra.mxu0 0
        %802 = vmatprep.subr.bf16.mxu0 0
        %803 = vmatpush2.bf16.msra.mxu0 0
        %804 = vmatprep.subr.bf16.mxu0 0
        %805 = vmatpush2.bf16.msra.mxu0 0
        %806 = vmatprep.subr.bf16.mxu0 0
        %807 = vmatpush2.bf16.msra.mxu0 0
        %808 = vmatprep.mubr.bf16.mxu0 0
        %809 = vmatmul.mubr.bf16.gmra.mxu0 %v770
        %v810 = vpop.f32.mrf.mxu0
        %v811 = vadd.f32 0.0, %v810
        %v812 = vpop.f32.mrf.mxu0
        %v813 = vpop.f32.mrf.mxu0
        %v814 = vpop.f32.mrf.mxu0
        %815 = vdwg.mxu0
        %v816 = vpack.c.bf16 %v811, %v811
        %817 = vrot.lane.b32.xlu0 %v697, 112
        %v818 = vpop.permute.xlu0 %817
        %819 = vrot.lane.b32.xlu0 %v697, 80
        %v820 = vpop.permute.xlu0 %819
        %v822 = vsel %vm707, %v818, 0
        %v825 = vsel %vm707, %v820, 0
        %827 = vmatprep.subr.bf16.mxu0 0
        %828 = vmatpush1.bf16.xpose.msra.mxu0 0
        %829 = vmatprep.subr.bf16.mxu0 0
        %830 = vmatpush1.bf16.xpose.msra.mxu0 0
        %831 = vmatprep.subr.bf16.mxu0 0
        %832 = vmatpush1.bf16.xpose.msra.mxu0 0
        %833 = vmatprep.subr.bf16.mxu0 0
        %834 = vmatpush1.bf16.xpose.msra.mxu0 0
        %835 = vmatprep.subr.bf16.mxu0 0
        %836 = vmatpush1.bf16.xpose.msra.mxu0 0
        %837 = vmatprep.subr.bf16.mxu0 0
        %838 = vmatpush1.bf16.xpose.msra.mxu0 0
        %839 = vmatprep.subr.bf16.mxu0 0
        %840 = vmatpush1.bf16.xpose.msra.mxu0 0
        %841 = vmatprep.subr.bf16.mxu0 0
        %842 = vmatpush1.bf16.xpose.msra.mxu0 %v825
        %843 = vmatprep.subr.bf16.mxu0 0
        %844 = vmatpush2.bf16.xpose.msra.mxu0 0
        %845 = vmatprep.subr.bf16.mxu0 0
        %846 = vmatpush2.bf16.xpose.msra.mxu0 0
        %847 = vmatprep.subr.bf16.mxu0 0
        %848 = vmatpush2.bf16.xpose.msra.mxu0 0
        %849 = vmatprep.subr.bf16.mxu0 0
        %850 = vmatpush2.bf16.xpose.msra.mxu0 0
        %851 = vmatprep.subr.bf16.mxu0 0
        %852 = vmatpush2.bf16.xpose.msra.mxu0 0
        %853 = vmatprep.subr.bf16.mxu0 0
        %854 = vmatpush2.bf16.xpose.msra.mxu0 0
        %855 = vmatprep.subr.bf16.mxu0 0
        %856 = vmatpush2.bf16.xpose.msra.mxu0 0
        %857 = vmatprep.subr.bf16.mxu0 0
        %858 = vmatpush2.bf16.xpose.msra.mxu0 0
        %859 = vmatprep.mubr.bf16.mxu0 0
        %860 = vmatmul.mubr.bf16.gmra.mxu0 %v822
        %v861 = vpop.f32.mrf.mxu0
        %v862 = vadd.f32 %v702, %v861
        %v863 = vpop.f32.mrf.mxu0
        %v864 = vpop.f32.mrf.mxu0
        %v865 = vpop.f32.mrf.mxu0
        %866 = vdwg.mxu0
        %v867 = vsel %vm754, %v862, -inf
        %868 = vmax.xlane.f32.xlu0 %v867
        %v869 = vpop.xlane.xlu0 %868
        %v870 = vsub.f32 %v862, %v869
        %v871 = vmul.f32 %v870, 1.442695
        %v872 = vpow.pop %v871
        %v873 = vsel %vm754, %v872, 0.0
        %874 = vadd.xlane.f32.xlu0 %v873
        %v875 = vpop.xlane.xlu0 %874
        %v876 = vrcp.pop %v875
        %v877 = vmul.f32 %v872, %v876
        %v878 = vpack.c.bf16 %v877, %v877
        %879 = vrot.lane.b32.xlu0 %v697, 48
        %v880 = vpop.permute.xlu0 %879
        %v882 = vsel %vm754, %v878, 0
        %v885 = vsel %vm772, %v880, 0
        %887 = vmatprep.subr.bf16.mxu0 0
        %888 = vmatpush1.bf16.msra.mxu0 0
        %889 = vmatprep.subr.bf16.mxu0 0
        %890 = vmatpush1.bf16.msra.mxu0 0
        %891 = vmatprep.subr.bf16.mxu0 0
        %892 = vmatpush1.bf16.msra.mxu0 0
        %893 = vmatprep.subr.bf16.mxu0 0
        %894 = vmatpush1.bf16.msra.mxu0 0
        %895 = vmatprep.subr.bf16.mxu0 0
        %896 = vmatpush1.bf16.msra.mxu0 0
        %897 = vmatprep.subr.bf16.mxu0 0
        %898 = vmatpush1.bf16.msra.mxu0 0
        %899 = vmatprep.subr.bf16.mxu0 0
        %900 = vmatpush1.bf16.msra.mxu0 0
        %901 = vmatprep.subr.bf16.mxu0 0
        %902 = vmatpush1.bf16.msra.mxu0 %v885
        %903 = vmatprep.subr.bf16.mxu0 0
        %904 = vmatpush2.bf16.msra.mxu0 0
        %905 = vmatprep.subr.bf16.mxu0 0
        %906 = vmatpush2.bf16.msra.mxu0 0
        %907 = vmatprep.subr.bf16.mxu0 0
        %908 = vmatpush2.bf16.msra.mxu0 0
        %909 = vmatprep.subr.bf16.mxu0 0
        %910 = vmatpush2.bf16.msra.mxu0 0
        %911 = vmatprep.subr.bf16.mxu0 0
        %912 = vmatpush2.bf16.msra.mxu0 0
        %913 = vmatprep.subr.bf16.mxu0 0
        %914 = vmatpush2.bf16.msra.mxu0 0
        %915 = vmatprep.subr.bf16.mxu0 0
        %916 = vmatpush2.bf16.msra.mxu0 0
        %917 = vmatprep.subr.bf16.mxu0 0
        %918 = vmatpush2.bf16.msra.mxu0 0
        %919 = vmatprep.mubr.bf16.mxu0 0
        %920 = vmatmul.mubr.bf16.gmra.mxu0 %v882
        %v921 = vpop.f32.mrf.mxu0
        %v922 = vadd.f32 0.0, %v921
        %v923 = vpop.f32.mrf.mxu0
        %v924 = vpop.f32.mrf.mxu0
        %v925 = vpop.f32.mrf.mxu0
        %926 = vdwg.mxu0
        %v927 = vpack.c.bf16 %v922, %v922
        %v930 = vunpack.c.l.b16 %v695
        %v931 = vunpack.c.l.b16 %v696
        %v932 = vpack.c.b16 %v931, %v930
        %v935 = vsel %vm707, %v927, 0
        %937 = vmatprep.subr.bf16.mxu0 0
        %938 = vmatpush1.bf16.msra.mxu0 0
        %939 = vmatprep.subr.bf16.mxu0 0
        %940 = vmatpush1.bf16.msra.mxu0 0
        %941 = vmatprep.subr.bf16.mxu0 0
        %942 = vmatpush1.bf16.msra.mxu0 0
        %943 = vmatprep.subr.bf16.mxu0 0
        %944 = vmatpush1.bf16.msra.mxu0 0
        %945 = vmatprep.subr.bf16.mxu0 0
        %946 = vmatpush1.bf16.msra.mxu0 0
        %947 = vmatprep.subr.bf16.mxu0 0
        %948 = vmatpush1.bf16.msra.mxu0 0
        %949 = vmatprep.subr.bf16.mxu0 0
        %950 = vmatpush1.bf16.msra.mxu0 0
        %951 = vmatprep.subr.bf16.mxu0 0
        %952 = vmatpush1.bf16.msra.mxu0 %v932
        %953 = vmatprep.subr.bf16.mxu0 0
        %954 = vmatpush2.bf16.msra.mxu0 0
        %955 = vmatprep.subr.bf16.mxu0 0
        %956 = vmatpush2.bf16.msra.mxu0 0
        %957 = vmatprep.subr.bf16.mxu0 0
        %958 = vmatpush2.bf16.msra.mxu0 0
        %959 = vmatprep.subr.bf16.mxu0 0
        %960 = vmatpush2.bf16.msra.mxu0 0
        %961 = vmatprep.subr.bf16.mxu0 0
        %962 = vmatpush2.bf16.msra.mxu0 0
        %963 = vmatprep.subr.bf16.mxu0 0
        %964 = vmatpush2.bf16.msra.mxu0 0
        %965 = vmatprep.subr.bf16.mxu0 0
        %966 = vmatpush2.bf16.msra.mxu0 0
        %967 = vmatprep.subr.bf16.mxu0 0
        %968 = vmatpush2.bf16.msra.mxu0 0
        %969 = vmatprep.mubr.bf16.mxu0 0
        %970 = vmatmul.mubr.bf16.gmra.mxu0 %v935
        %v971 = vpop.f32.mrf.mxu0
        %v972 = vadd.f32 0.0, %v971
        %v973 = vpop.f32.mrf.mxu0
        %v974 = vpop.f32.mrf.mxu0
        %v975 = vpop.f32.mrf.mxu0
        %976 = vdwg.mxu0
        %v979 = vunpack.c.l.b16 %v693
        %v980 = vunpack.c.l.b16 %v694
        %v981 = vpack.c.b16 %v980, %v979
        %v984 = vsel %vm707, %v816, 0
        %986 = vmatprep.subr.bf16.mxu0 0
        %987 = vmatpush1.bf16.msra.mxu0 0
        %988 = vmatprep.subr.bf16.mxu0 0
        %989 = vmatpush1.bf16.msra.mxu0 0
        %990 = vmatprep.subr.bf16.mxu0 0
        %991 = vmatpush1.bf16.msra.mxu0 0
        %992 = vmatprep.subr.bf16.mxu0 0
        %993 = vmatpush1.bf16.msra.mxu0 0
        %994 = vmatprep.subr.bf16.mxu0 0
        %995 = vmatpush1.bf16.msra.mxu0 0
        %996 = vmatprep.subr.bf16.mxu0 0
        %997 = vmatpush1.bf16.msra.mxu0 0
        %998 = vmatprep.subr.bf16.mxu0 0
        %999 = vmatpush1.bf16.msra.mxu0 0
        %1000 = vmatprep.subr.bf16.mxu0 0
        %1001 = vmatpush1.bf16.msra.mxu0 %v981
        %1002 = vmatprep.subr.bf16.mxu0 0
        %1003 = vmatpush2.bf16.msra.mxu0 0
        %1004 = vmatprep.subr.bf16.mxu0 0
        %1005 = vmatpush2.bf16.msra.mxu0 0
        %1006 = vmatprep.subr.bf16.mxu0 0
        %1007 = vmatpush2.bf16.msra.mxu0 0
        %1008 = vmatprep.subr.bf16.mxu0 0
        %1009 = vmatpush2.bf16.msra.mxu0 0
        %1010 = vmatprep.subr.bf16.mxu0 0
        %1011 = vmatpush2.bf16.msra.mxu0 0
        %1012 = vmatprep.subr.bf16.mxu0 0
        %1013 = vmatpush2.bf16.msra.mxu0 0
        %1014 = vmatprep.subr.bf16.mxu0 0
        %1015 = vmatpush2.bf16.msra.mxu0 0
        %1016 = vmatprep.subr.bf16.mxu0 0
        %1017 = vmatpush2.bf16.msra.mxu0 0
        %1018 = vmatprep.mubr.bf16.mxu0 0
        %1019 = vmatmul.mubr.bf16.gmra.mxu0 %v984
        %v1020 = vpop.f32.mrf.mxu0
        %v1021 = vadd.f32 %v972, %v1020
        %v1022 = vpop.f32.mrf.mxu0
        %v1023 = vpop.f32.mrf.mxu0
        %v1024 = vpop.f32.mrf.mxu0
        %1025 = vdwg.mxu0
        %v1026 = vlaneseq
        %v1027 = vshrl.u32 %v1026, 7
        %v1028 = vsub.s32 1, %v1027
        %v1029 = vrot.slane %v626, %v1028
        %v1030 = vadd.f32 %v1021, %v1029
        %v1031 = vadd.f32 %v625, %v1030
        %v1032 = vsel %vm649, %v1031, 0.0
        %1033 = vadd.xlane.f32.xlu0 %v1032
        %v1034 = vpop.xlane.xlu0 %1033
        %v1035 = vrcp.pop 32.0
        %v1036 = vmul.f32 %v1034, %v1035
        %v1037 = vsub.f32 %v1031, %v1036
        %v1038 = vmul.f32 %v1037, %v1037
        %v1039 = vsel %vm649, %v1038, 0.0
        %1040 = vadd.xlane.f32.xlu0 %v1039
        %v1041 = vpop.xlane.xlu0 %1040
        %v1042 = vmul.f32 %v1041, %v1035
        %v1043 = vadd.f32 %v1042, 1e-12
        %v1044 = vrsqrt.pop %v1043
        %v1045 = vmul.f32 %v1037, %v1044
        %v1046 = vlaneseq
        %v1047 = vshrl.u32 %v1046, 7
        %v1048 = vsub.s32 2, %v1047
        %v1049 = vrot.slane %v626, %v1048
        %v1050 = vmul.f32 %v1045, %v1049
        %v1051 = vlaneseq
        %v1052 = vshrl.u32 %v1051, 7
        %v1053 = vsub.s32 3, %v1052
        %v1054 = vrot.slane %v626, %v1053
        %v1055 = vadd.f32 %v1050, %v1054
        %v1056 = vpack.c.bf16 %v1055, %v1055
        %v1057 = vld [vmem:[%s581] sm:$0xf]
        %v1058 = vld [vmem:[%s581 + $0x4] sm:$0xf]
        %v1059 = vld [vmem:[%s581 + $0x8] sm:$0xf]
        %v1060 = vld [vmem:[%s581 + $0xc] sm:$0xf]
        %v1061 = vlaneseq
        %v1062 = vshrl.u32 %v1061, 7
        %v1063 = vsub.s32 4, %v1062
        %v1064 = vrot.slane %v626, %v1063
        %v1069 = vunpack.c.l.b16 %v1057
        %v1070 = vunpack.c.l.b16 %v1058
        %v1071 = vunpack.c.l.b16 %v1059
        %v1072 = vunpack.c.l.b16 %v1060
        %v1073 = vpack.c.b16 %v1070, %v1069
        %v1074 = vpack.c.b16 %v1072, %v1071
        %v1078 = vsel %vm649, %v1056, 0
        %1080 = vmatprep.subr.bf16.mxu0 0
        %1081 = vmatpush1.bf16.msra.mxu0 0
        %1082 = vmatprep.subr.bf16.mxu0 0
        %1083 = vmatpush1.bf16.msra.mxu0 0
        %1084 = vmatprep.subr.bf16.mxu0 0
        %1085 = vmatpush1.bf16.msra.mxu0 0
        %1086 = vmatprep.subr.bf16.mxu0 0
        %1087 = vmatpush1.bf16.msra.mxu0 0
        %1088 = vmatprep.subr.bf16.mxu0 0
        %1089 = vmatpush1.bf16.msra.mxu0 0
        %1090 = vmatprep.subr.bf16.mxu0 0
        %1091 = vmatpush1.bf16.msra.mxu0 0
        %1092 = vmatprep.subr.bf16.mxu0 0
        %1093 = vmatpush1.bf16.msra.mxu0 %v1074
        %1094 = vmatprep.subr.bf16.mxu0 0
        %1095 = vmatpush1.bf16.msra.mxu0 %v1073
        %1096 = vmatprep.subr.bf16.mxu0 0
        %1097 = vmatpush2.bf16.msra.mxu0 0
        %1098 = vmatprep.subr.bf16.mxu0 0
        %1099 = vmatpush2.bf16.msra.mxu0 0
        %1100 = vmatprep.subr.bf16.mxu0 0
        %1101 = vmatpush2.bf16.msra.mxu0 0
        %1102 = vmatprep.subr.bf16.mxu0 0
        %1103 = vmatpush2.bf16.msra.mxu0 0
        %1104 = vmatprep.subr.bf16.mxu0 0
        %1105 = vmatpush2.bf16.msra.mxu0 0
        %1106 = vmatprep.subr.bf16.mxu0 0
        %1107 = vmatpush2.bf16.msra.mxu0 0
        %1108 = vmatprep.subr.bf16.mxu0 0
        %1109 = vmatpush2.bf16.msra.mxu0 0
        %1110 = vmatprep.subr.bf16.mxu0 0
        %1111 = vmatpush2.bf16.msra.mxu0 0
        %1112 = vmatprep.mubr.bf16.mxu0 0
        %1113 = vmatmul.mubr.bf16.gmra.mxu0 %v1078
        %v1114 = vpop.f32.mrf.mxu0
        %v1115 = vadd.f32 %v1064, %v1114
        %v1116 = vpop.f32.mrf.mxu0
        %v1117 = vpop.f32.mrf.mxu0
        %v1118 = vpop.f32.mrf.mxu0
        %1119 = vdwg.mxu0
        %v1120 = vmul.f32 %v1115, 0.5
        %v1121 = vmul.f32 %v1115, 0.044715
        %v1122 = vmul.f32 %v1121, %v1115
        %v1123 = vmul.f32 %v1122, %v1115
        %v1124 = vadd.f32 %v1115, %v1123
        %v1125 = vmul.f32 %v1124, 0.7978846
        %v1126 = vtanh.pop %v1125
        %v1127 = vadd.f32 %v1126, 1.0
        %v1128 = vmul.f32 %v1120, %v1127
        %v1129 = vpack.c.bf16 %v1128, %v1128
        %v1130 = vld [vmem:[%s586] sm:$0xf]
        %v1131 = vld [vmem:[%s586 + $0x4] sm:$0xf]
        %v1132 = vld [vmem:[%s586 + $0x8] sm:$0xf]
        %v1133 = vld [vmem:[%s586 + $0xc] sm:$0xf]
        %v1134 = vld [vmem:[%s586 + $0x10] sm:$0xf]
        %v1135 = vld [vmem:[%s586 + $0x14] sm:$0xf]
        %v1136 = vld [vmem:[%s586 + $0x18] sm:$0xf]
        %v1137 = vld [vmem:[%s586 + $0x1c] sm:$0xf]
        %v1138 = vlaneseq
        %v1139 = vshrl.u32 %v1138, 7
        %v1140 = vsub.s32 5, %v1139
        %v1141 = vrot.slane %v626, %v1140
        %v1150 = vunpack.c.l.b16 %v1130
        %v1151 = vunpack.c.l.b16 %v1131
        %v1152 = vunpack.c.l.b16 %v1132
        %v1153 = vunpack.c.l.b16 %v1133
        %v1154 = vunpack.c.l.b16 %v1134
        %v1155 = vunpack.c.l.b16 %v1135
        %v1156 = vunpack.c.l.b16 %v1136
        %v1157 = vunpack.c.l.b16 %v1137
        %v1158 = vpack.c.b16 %v1151, %v1150
        %v1159 = vpack.c.b16 %v1153, %v1152
        %v1160 = vpack.c.b16 %v1155, %v1154
        %v1161 = vpack.c.b16 %v1157, %v1156
        %vm1166 = vcmask 523264
        %v1168 = vsel %vm1166, %v1129, 0
        %1170 = vmatprep.subr.bf16.mxu0 0
        %1171 = vmatpush1.bf16.msra.mxu0 0
        %1172 = vmatprep.subr.bf16.mxu0 0
        %1173 = vmatpush1.bf16.msra.mxu0 0
        %1174 = vmatprep.subr.bf16.mxu0 0
        %1175 = vmatpush1.bf16.msra.mxu0 0
        %1176 = vmatprep.subr.bf16.mxu0 0
        %1177 = vmatpush1.bf16.msra.mxu0 0
        %1178 = vmatprep.subr.bf16.mxu0 0
        %1179 = vmatpush1.bf16.msra.mxu0 %v1161
        %1180 = vmatprep.subr.bf16.mxu0 0
        %1181 = vmatpush1.bf16.msra.mxu0 %v1160
        %1182 = vmatprep.subr.bf16.mxu0 0
        %1183 = vmatpush1.bf16.msra.mxu0 %v1159
        %1184 = vmatprep.subr.bf16.mxu0 0
        %1185 = vmatpush1.bf16.msra.mxu0 %v1158
        %1186 = vmatprep.subr.bf16.mxu0 0
        %1187 = vmatpush2.bf16.msra.mxu0 0
        %1188 = vmatprep.subr.bf16.mxu0 0
        %1189 = vmatpush2.bf16.msra.mxu0 0
        %1190 = vmatprep.subr.bf16.mxu0 0
        %1191 = vmatpush2.bf16.msra.mxu0 0
        %1192 = vmatprep.subr.bf16.mxu0 0
        %1193 = vmatpush2.bf16.msra.mxu0 0
        %1194 = vmatprep.subr.bf16.mxu0 0
        %1195 = vmatpush2.bf16.msra.mxu0 0
        %1196 = vmatprep.subr.bf16.mxu0 0
        %1197 = vmatpush2.bf16.msra.mxu0 0
        %1198 = vmatprep.subr.bf16.mxu0 0
        %1199 = vmatpush2.bf16.msra.mxu0 0
        %1200 = vmatprep.subr.bf16.mxu0 0
        %1201 = vmatpush2.bf16.msra.mxu0 0
        %1202 = vmatprep.mubr.bf16.mxu0 0
        %1203 = vmatmul.mubr.bf16.gmra.mxu0 %v1168
        %v1204 = vpop.f32.mrf.mxu0
        %v1205 = vadd.f32 %v1141, %v1204
        %v1206 = vpop.f32.mrf.mxu0
        %v1207 = vpop.f32.mrf.mxu0
        %v1208 = vpop.f32.mrf.mxu0
        %1209 = vdwg.mxu0
        %v1210 = vadd.f32 %v1055, %v1205
        %v1211 = vsel %vm649, %v1210, 0.0
        %1212 = vadd.xlane.f32.xlu0 %v1211
        %v1213 = vpop.xlane.xlu0 %1212
        %v1214 = vmul.f32 %v1213, %v1035
        %v1215 = vsub.f32 %v1210, %v1214
        %v1216 = vmul.f32 %v1215, %v1215
        %v1217 = vsel %vm649, %v1216, 0.0
        %1218 = vadd.xlane.f32.xlu0 %v1217
        %v1219 = vpop.xlane.xlu0 %1218
        %v1220 = vmul.f32 %v1219, %v1035
        %v1221 = vadd.f32 %v1220, 1e-12
        %v1222 = vrsqrt.pop %v1221
        %v1223 = vmul.f32 %v1215, %v1222
        %v1224 = vlaneseq
        %v1225 = vshrl.u32 %v1224, 7
        %v1226 = vsub.s32 6, %v1225
        %v1227 = vrot.slane %v626, %v1226
        %v1228 = vmul.f32 %v1223, %v1227
        %v1229 = vlaneseq
        %v1230 = vshrl.u32 %v1229, 7
        %v1231 = vsub.s32 7, %v1230
        %v1232 = vrot.slane %v626, %v1231
        %v1233 = vadd.f32 %v1228, %v1232
        %1234 = vst.msk [vmem:[#allocation2] sm:$0xff] %vm649, %v1233
        %p1235 = scmp.eq.s32.totalorder %s37, 1
        // Predicated region
        $region89: #{tpu_custom_call.1} parent=63 // pred_check
          %p1236 = pneg %p1235
        $region90: #{tpu_custom_call.1} parent=63 // pred_check_branch
          %1238 = sbr.rel (%p1236) target = $region92
        $region91: #{tpu_custom_call.1} parent=63 // pred_region
          %v1239 = vpack.c.bf16 %v1233, %v1233
          %v1240 = vld [vmem:[%s9] sm:$0xf]
          %v1241 = vld [vmem:[%s9 + $0x4] sm:$0xf]
          %v1242 = vld [vmem:[%s9 + $0x8] sm:$0xf]
          %v1243 = vld [vmem:[%s9 + $0xc] sm:$0xf]
          %v1244 = vld [vmem:[%s10] sm:$0x1]
          %v1246 = vlaneseq
          %v1247 = vshrl.u32 %v1246, 7
          %v1248 = vsub.s32 0, %v1247
          %v1249 = vrot.slane %v1244, %v1248
          %v1255 = vunpack.c.l.b16 %v1240
          %v1256 = vunpack.c.l.b16 %v1241
          %v1257 = vunpack.c.l.b16 %v1242
          %v1258 = vunpack.c.l.b16 %v1243
          %v1259 = vpack.c.b16 %v1256, %v1255
          %v1260 = vpack.c.b16 %v1258, %v1257
          %v1264 = vsel %vm649, %v1239, 0
          %1266 = vmatprep.subr.bf16.mxu0 0
          %1267 = vmatpush1.bf16.msra.mxu0 0
          %1268 = vmatprep.subr.bf16.mxu0 0
          %1269 = vmatpush1.bf16.msra.mxu0 0
          %1270 = vmatprep.subr.bf16.mxu0 0
          %1271 = vmatpush1.bf16.msra.mxu0 0
          %1272 = vmatprep.subr.bf16.mxu0 0
          %1273 = vmatpush1.bf16.msra.mxu0 0
          %1274 = vmatprep.subr.bf16.mxu0 0
          %1275 = vmatpush1.bf16.msra.mxu0 0
          %1276 = vmatprep.subr.bf16.mxu0 0
          %1277 = vmatpush1.bf16.msra.mxu0 0
          %1278 = vmatprep.subr.bf16.mxu0 0
          %1279 = vmatpush1.bf16.msra.mxu0 %v1260
          %1280 = vmatprep.subr.bf16.mxu0 0
          %1281 = vmatpush1.bf16.msra.mxu0 %v1259
          %1282 = vmatprep.subr.bf16.mxu0 0
          %1283 = vmatpush2.bf16.msra.mxu0 0
          %1284 = vmatprep.subr.bf16.mxu0 0
          %1285 = vmatpush2.bf16.msra.mxu0 0
          %1286 = vmatprep.subr.bf16.mxu0 0
          %1287 = vmatpush2.bf16.msra.mxu0 0
          %1288 = vmatprep.subr.bf16.mxu0 0
          %1289 = vmatpush2.bf16.msra.mxu0 0
          %1290 = vmatprep.subr.bf16.mxu0 0
          %1291 = vmatpush2.bf16.msra.mxu0 0
          %1292 = vmatprep.subr.bf16.mxu0 0
          %1293 = vmatpush2.bf16.msra.mxu0 0
          %1294 = vmatprep.subr.bf16.mxu0 0
          %1295 = vmatpush2.bf16.msra.mxu0 0
          %1296 = vmatprep.subr.bf16.mxu0 0
          %1297 = vmatpush2.bf16.msra.mxu0 0
          %1298 = vmatprep.mubr.bf16.mxu0 0
          %1299 = vmatmul.mubr.bf16.gmra.mxu0 %v1264
          %v1300 = vpop.f32.mrf.mxu0
          %v1301 = vadd.f32 %v1249, %v1300
          %v1302 = vpop.f32.mrf.mxu0
          %v1303 = vpop.f32.mrf.mxu0
          %v1304 = vpop.f32.mrf.mxu0
          %1305 = vdwg.mxu0
          %1306 = vst [vmem:[%s566] sm:$0xff] %v1301
        $region92: #{tpu_custom_call.1} parent=63 // pred_fallthru
          _
        %s1307 = sand.u32 %s318, 1
        %s1308 = scalar_lea.sflag [#allocation5], %s1307
        %s1309 = sand.u32 %s318, 1
        %s1310 = smul.addr %s1309, 8
        %s1311 = scalar_lea.vmem [#allocation12], %s1310
        // Predicated region
        $region93: #{tpu_custom_call.1} parent=63 // pred_check
          %p1312 = pneg %p328
        $region94: #{tpu_custom_call.1} parent=63 // pred_check_branch
          %1314 = sbr.rel (%p1312) target = $region96
        $region95: #{tpu_custom_call.1} parent=63 // pred_region
          %s1316 = ssub.s32 128, 128
          %1317 = vsyncadd %s1308, %s1316
          %s1318 = smul.addr %s36, 128
          %s1319 = scalar_lea.hbm %s11, %s1318
          %s1321 = sshll.u32 %s1311, 4
          %s1322 = int_to_ptr.vmem [resolvable:$true] %s1321
          %1324 = dma.vmem_to_hbm [thread:$0]  %s1322, 128, %s1319, %s1308
        $region96: #{tpu_custom_call.1} parent=63 // pred_fallthru
          _
      $region64: #{tpu_custom_call.1} parent=5 // pred_fallthru
        _
      %p1325 = scmp.le.s32.totalorder 2, %s27
      // Predicated region
      $region97: #{tpu_custom_call.1} parent=5 // pred_check
        %p1326 = pneg %p1325
      $region98: #{tpu_custom_call.1} parent=5 // pred_check_branch
        %1328 = sbr.rel (%p1326) target = $region100
      $region99: #{tpu_custom_call.1} parent=5 // pred_region
        %s1329 = ssub.s32 %s27, 2
        // Predicated region
        $region101: #{tpu_custom_call.1} parent=99 // pred_check
          %p1330 = pneg %p334
        $region102: #{tpu_custom_call.1} parent=99 // pred_check_branch
          %1332 = sbr.rel (%p1330) target = $region104
        $region103: #{tpu_custom_call.1} parent=99 // pred_region
          %s1333 = sand.u32 %s319, 1
          %s1334 = scalar_lea.sflag [#allocation5], %s1333
          %s1335 = sand.u32 %s319, 1
          %s1336 = smul.addr %s1335, 8
          %s1337 = scalar_lea.vmem [#allocation12], %s1336
          %1338 = dma.done %s1334, 128
        $region104: #{tpu_custom_call.1} parent=99 // pred_fallthru
          _
      $region100: #{tpu_custom_call.1} parent=5 // pred_fallthru
        _
    $region6: #{tpu_custom_call.1} parent=1 // loop_footer
      %s31 = sadd.s32 1, %s27
    $region7: #{tpu_custom_call.1} parent=1 // loop_footer_branch
      %26 = sbr.rel target = $region3
    $region8: #{tpu_custom_call.1} parent=1 // loop_exit
      _
    %1339 = vsyncpa [#allocation4], 1
    %s1340 = scalar_lea.sflag [#allocation4], 1
    %1341 = vsyncpa %s1340, 1
    %1342 = vsyncpa [#allocation7], 1
    %s1343 = scalar_lea.sflag [#allocation7], 1
    %1344 = vsyncpa %s1343, 1
    %1345 = vsyncpa [#allocation10], 1
    %1346 = vsyncpa [#allocation5], 1
    %s1347 = scalar_lea.sflag [#allocation5], 1
    %1348 = vsyncpa %s1347, 1

</llo_original>
